<compile_context>
chip_gen: v6e
topology: v6e:2x2x1
jax: 0.10.0
libtpu: 0.0.40
codegen_flags: <defaults>
</compile_context>

<pallas_src>
import jax
import jax.numpy as jnp
from jax import lax
from jax.experimental import pallas as pl
from jax.experimental.pallas import tpu as pltpu


def lstm_classifier_kernel(len_ref, emb_ref, w_ih_ref, w_hh_ref, b_ref,
                           w_fc_ref, b_fc_ref, out_ref, gx_sc):
    TB = emb_ref.shape[0]
    B = len_ref.shape[0]
    T = TB // B
    H = w_hh_ref.shape[0]

    # (1) Hoisted input projection + bias: no dependence on h, so compute it for all
    #     timesteps in one big matmul and keep it in VMEM scratch.
    gx_sc[...] = (
        jnp.dot(emb_ref[...], w_ih_ref[...], preferred_element_type=jnp.float32)
        + b_ref[...]
    )  # (T*B, 4H), PyTorch gate order [i, f, g, o]

    w_hh = w_hh_ref[...]
    lengths = len_ref[...]                       # (B, 1) int32

    # (2) Lane mask for full-vreg activation blending (hoisted out of the loop — JAX does
    #     not CSE broadcast/iota inside loops).
    lane = lax.broadcasted_iota(jnp.int32, (B, 4 * H), 1)
    is_g = (lane >= 2 * H) & (lane < 3 * H)

    # (3) Register-carried state, (4) static unroll of the T-step recurrence.
    h = jnp.zeros((B, H), jnp.float32)
    c = jnp.zeros((B, H), jnp.float32)
    for t in range(T):
        gx_t = gx_sc[t * B:(t + 1) * B, :]       # static, sublane-aligned slice (rows % 8 == 0)
        gates = gx_t + jnp.dot(h, w_hh, preferred_element_type=jnp.float32)  # (B, 4H)
        # Full-block sigmoid & tanh, then select the tanh result on the g-gate lanes.
        act = jnp.where(is_g, jnp.tanh(gates), jax.nn.sigmoid(gates))
        i_g = act[:, 0:H]
        f_g = act[:, H:2 * H]
        g_g = act[:, 2 * H:3 * H]
        o_g = act[:, 3 * H:4 * H]
        c = f_g * c + i_g * g_g                  # c needs no mask: once a row is frozen,
        h_new = o_g * jnp.tanh(c)                # its h never reads c again.
        h = jnp.where(t < lengths, h_new, h)     # packed-sequence freeze of h

    # Final fully connected layer: Linear(H, 1) applied to h at the last valid step.
    out_ref[...] = jnp.sum(h * w_fc_ref[...], axis=-1, keepdims=True) + b_fc_ref[...]


def rnn_classifier_forward(tokens, lengths, params):
    """tokens: (B, T) int32, lengths: (B,) int32. Returns (B,) float32 logits."""
    B, T = tokens.shape
    emb_table = params["embedding"]              # (V, E), pad row zeroed
    H = params["w_hh"].shape[0]

    # Embedding lookup (glue, plain JAX): gather time-major directly so no separate
    # (B, T, E) -> (T, B, E) transpose pass is materialized. Row t*B + b = token[b, t].
    emb_tm = jnp.take(emb_table, tokens.T.reshape(-1), axis=0)   # (T*B, E)

    out = pl.pallas_call(
        lstm_classifier_kernel,
        out_shape=jax.ShapeDtypeStruct((B, 1), jnp.float32),
        in_specs=[
            pl.BlockSpec(memory_space=pltpu.MemorySpace.VMEM),  # lengths (B, 1)
            pl.BlockSpec(memory_space=pltpu.MemorySpace.VMEM),  # emb_tm  (T*B, E)
            pl.BlockSpec(memory_space=pltpu.MemorySpace.VMEM),  # w_ih    (E, 4H)
            pl.BlockSpec(memory_space=pltpu.MemorySpace.VMEM),  # w_hh    (H, 4H)
            pl.BlockSpec(memory_space=pltpu.MemorySpace.VMEM),  # bias    (1, 4H)
            pl.BlockSpec(memory_space=pltpu.MemorySpace.VMEM),  # w_fc    (1, H)
            pl.BlockSpec(memory_space=pltpu.MemorySpace.VMEM),  # b_fc    (1, 1)
        ],
        out_specs=pl.BlockSpec(memory_space=pltpu.MemorySpace.VMEM),
        scratch_shapes=[
            pltpu.VMEM((T * B, 4 * H), jnp.float32),   # precomputed gates_x
        ],
    )(
        lengths.reshape(B, 1).astype(jnp.int32),
        emb_tm.astype(jnp.float32),
        params["w_ih"],
        params["w_hh"],
        params["bias"],
        params["w_fc"],
        params["b_fc"],
    )
    return out[:, 0]  # matches torch .squeeze() -> (B,)


def reference_forward(tokens, lengths, params):
    """Pure-JAX reference implementing the same semantics (for validation)."""
    emb = jnp.take(params["embedding"], tokens, axis=0)  # (B, T, E)
    B, T, E = emb.shape
    H = params["w_hh"].shape[0]

    def cell(carry, x_t_and_t):
        h, c = carry
        x_t, t = x_t_and_t
        gates = x_t @ params["w_ih"] + h @ params["w_hh"] + params["bias"]
        i_g = jax.nn.sigmoid(gates[:, 0:H])
        f_g = jax.nn.sigmoid(gates[:, H:2 * H])
        g_g = jnp.tanh(gates[:, 2 * H:3 * H])
        o_g = jax.nn.sigmoid(gates[:, 3 * H:4 * H])
        c_new = f_g * c + i_g * g_g
        h_new = o_g * jnp.tanh(c_new)
        active = (t < lengths)[:, None]
        h = jnp.where(active, h_new, h)
        c = jnp.where(active, c_new, c)
        return (h, c), None

    h0 = jnp.zeros((B, H), jnp.float32)
    c0 = jnp.zeros((B, H), jnp.float32)
    xs = (jnp.transpose(emb, (1, 0, 2)), jnp.arange(T))
    (h, _), _ = lax.scan(cell, (h0, c0), xs)
    logits = jnp.sum(h * params["w_fc"], axis=-1) + params["b_fc"][0, 0]
    return logits


def make_params(key, vocab_size, emb_dim, hidden_dim, pad_idx):
    k = jax.random.split(key, 7)
    s = 1.0 / jnp.sqrt(hidden_dim)
    emb = jax.random.normal(k[0], (vocab_size, emb_dim), jnp.float32)
    emb = emb.at[pad_idx].set(0.0)  # padding_idx row is zero in nn.Embedding
    params = {
        "embedding": emb,
        # PyTorch stores weight_ih_l0 as (4H, E); we keep the transposed (E, 4H).
        "w_ih": jax.random.uniform(k[1], (emb_dim, 4 * hidden_dim), jnp.float32, -s, s),
        "w_hh": jax.random.uniform(k[2], (hidden_dim, 4 * hidden_dim), jnp.float32, -s, s),
        # bias = bias_ih + bias_hh, folded together
        "bias": (jax.random.uniform(k[3], (1, 4 * hidden_dim), jnp.float32, -s, s)
                 + jax.random.uniform(k[4], (1, 4 * hidden_dim), jnp.float32, -s, s)),
        "w_fc": jax.random.uniform(k[5], (1, hidden_dim), jnp.float32, -s, s),
        "b_fc": jax.random.uniform(k[6], (1, 1), jnp.float32, -s, s),
    }
    return params


if __name__ == "__main__":
    B, T = 8, 10
    VOCAB, EMB_DIM, HIDDEN = 50, 32, 64
    PAD_IDX = 0

    key = jax.random.PRNGKey(0)
    k_tok, k_len, k_par = jax.random.split(key, 3)

    params = make_params(k_par, VOCAB, EMB_DIM, HIDDEN, PAD_IDX)

    # Deterministic padded sentences: random tokens, per-sequence lengths in [1, T],
    # at least one full-length sequence (as the torch .view(B, T, 1) requires).
    lengths = jax.random.randint(k_len, (B,), 1, T + 1).astype(jnp.int32)
    lengths = lengths.at[0].set(T)
    tokens = jax.random.randint(k_tok, (B, T), 1, VOCAB).astype(jnp.int32)
    pos = jnp.arange(T)[None, :]
    tokens = jnp.where(pos < lengths[:, None], tokens, PAD_IDX)

    logits = rnn_classifier_forward(tokens, lengths, params)
    logits = jax.block_until_ready(logits)

    ref = reference_forward(tokens, lengths, params)
    assert logits.shape == (B,)
    assert jnp.allclose(logits, ref, atol=1e-4, rtol=1e-4), (logits, ref)

    print("KERNEL_OK")
</pallas_src>

<mosaic_0001>
module attributes {stable_mosaic.version = 11 : i64} {
  func.func @lstm_classifier_kernel(%arg0: memref<8x1xi32, #tpu.memory_space<vmem>>, %arg1: memref<80x32xf32, #tpu.memory_space<vmem>>, %arg2: memref<32x256xf32, #tpu.memory_space<vmem>>, %arg3: memref<64x256xf32, #tpu.memory_space<vmem>>, %arg4: memref<1x256xf32, #tpu.memory_space<vmem>>, %arg5: memref<1x64xf32, #tpu.memory_space<vmem>>, %arg6: memref<1x1xf32, #tpu.memory_space<vmem>>, %arg7: memref<8x1xf32, #tpu.memory_space<vmem>>, %arg8: memref<80x256xf32, #tpu.memory_space<vmem>>) attributes {dimension_semantics = [], scalar_prefetch = 0 : i64, scratch_operands = 1 : i64, tpu.core_type = #tpu.core_type<tc>} {
    %c0 = arith.constant 0 : index
    %c0_0 = arith.constant 0 : index
    %0 = vector.load %arg1[%c0, %c0_0] : memref<80x32xf32, #tpu.memory_space<vmem>>, vector<80x32xf32>
    %c0_1 = arith.constant 0 : index
    %c0_2 = arith.constant 0 : index
    %1 = vector.load %arg2[%c0_1, %c0_2] : memref<32x256xf32, #tpu.memory_space<vmem>>, vector<32x256xf32>
    %cst = arith.constant dense<0.000000e+00> : vector<80x256xf32>
    %2 = tpu.matmul %0, %1, %cst {dimension_numbers = #tpu.dot_dimension_numbers<[1], [0], [0], [1], [0, 0, 1, 1], [], []>} : vector<80x32xf32>, vector<32x256xf32>, vector<80x256xf32> -> vector<80x256xf32>
    %c0_3 = arith.constant 0 : index
    %c0_4 = arith.constant 0 : index
    %3 = vector.load %arg4[%c0_3, %c0_4] : memref<1x256xf32, #tpu.memory_space<vmem>>, vector<1x256xf32>
    %4 = vector.broadcast %3 : vector<1x256xf32> to vector<80x256xf32>
    %5 = arith.addf %2, %4 : vector<80x256xf32>
    %c0_5 = arith.constant 0 : index
    %c0_6 = arith.constant 0 : index
    %6 = vector.load %arg8[%c0_5, %c0_6] : memref<80x256xf32, #tpu.memory_space<vmem>>, vector<80x256xf32>
    tpu.vector_store %arg8[%c0_5, %c0_6], %5 {strides = array<i32>} : memref<80x256xf32, #tpu.memory_space<vmem>>, vector<80x256xf32>,
    %c0_7 = arith.constant 0 : index
    %c0_8 = arith.constant 0 : index
    %7 = vector.load %arg3[%c0_7, %c0_8] : memref<64x256xf32, #tpu.memory_space<vmem>>, vector<64x256xf32>
    %c0_9 = arith.constant 0 : index
    %c0_10 = arith.constant 0 : index
    %8 = vector.load %arg0[%c0_9, %c0_10] : memref<8x1xi32, #tpu.memory_space<vmem>>, vector<8x1xi32>
    %9 = tpu.iota {dimensions = array<i32: 1>} : vector<8x256xi32>
    %c128_i32 = arith.constant 128 : i32
    %10 = vector.broadcast %c128_i32 : i32 to vector<8x256xi32>
    %11 = arith.cmpi sge, %9, %10 : vector<8x256xi32>
    %c192_i32 = arith.constant 192 : i32
    %12 = vector.broadcast %c192_i32 : i32 to vector<8x256xi32>
    %13 = arith.cmpi slt, %9, %12 : vector<8x256xi32>
    %14 = arith.andi %11, %13 : vector<8x256xi1>
    %cst_11 = arith.constant 0.000000e+00 : f32
    %15 = vector.broadcast %cst_11 : f32 to vector<8x64xf32>
    %cst_12 = arith.constant 0.000000e+00 : f32
    %16 = vector.broadcast %cst_12 : f32 to vector<8x64xf32>
    %c0_13 = arith.constant 0 : index
    %c0_14 = arith.constant 0 : index
    %17 = vector.load %arg8[%c0_13, %c0_14] : memref<80x256xf32, #tpu.memory_space<vmem>>, vector<8x256xf32>
    %cst_15 = arith.constant dense<0.000000e+00> : vector<8x256xf32>
    %18 = tpu.matmul %15, %7, %cst_15 {dimension_numbers = #tpu.dot_dimension_numbers<[1], [0], [0], [1], [0, 0, 1, 1], [], []>} : vector<8x64xf32>, vector<64x256xf32>, vector<8x256xf32> -> vector<8x256xf32>
    %19 = arith.addf %17, %18 : vector<8x256xf32>
    %20 = math.tanh %19 : vector<8x256xf32>
    %21 = arith.negf %19 : vector<8x256xf32>
    %22 = math.exp %21 : vector<8x256xf32>
    %cst_16 = arith.constant 1.000000e+00 : f32
    %23 = vector.broadcast %cst_16 : f32 to vector<8x256xf32>
    %24 = arith.addf %23, %22 : vector<8x256xf32>
    %25 = arith.divf %23, %24 : vector<8x256xf32>
    %26 = arith.select %14, %20, %25 : vector<8x256xi1>, vector<8x256xf32>
    %27 = vector.extract_strided_slice %26 {offsets = [0, 0], sizes = [8, 64], strides = [1, 1]} : vector<8x256xf32> to vector<8x64xf32>
    %28 = vector.extract_strided_slice %26 {offsets = [0, 64], sizes = [8, 64], strides = [1, 1]} : vector<8x256xf32> to vector<8x64xf32>
    %29 = vector.extract_strided_slice %26 {offsets = [0, 128], sizes = [8, 64], strides = [1, 1]} : vector<8x256xf32> to vector<8x64xf32>
    %30 = vector.extract_strided_slice %26 {offsets = [0, 192], sizes = [8, 64], strides = [1, 1]} : vector<8x256xf32> to vector<8x64xf32>
    %31 = arith.mulf %28, %16 : vector<8x64xf32>
    %32 = arith.mulf %27, %29 : vector<8x64xf32>
    %33 = arith.addf %31, %32 : vector<8x64xf32>
    %34 = math.tanh %33 : vector<8x64xf32>
    %35 = arith.mulf %30, %34 : vector<8x64xf32>
    %c0_i32 = arith.constant 0 : i32
    %36 = vector.broadcast %c0_i32 : i32 to vector<8x1xi32>
    %37 = arith.cmpi sgt, %8, %36 : vector<8x1xi32>
    %38 = vector.shape_cast %37 : vector<8x1xi1> to vector<8x1xi1>
    %39 = vector.broadcast %38 : vector<8x1xi1> to vector<8x64xi1>
    %40 = arith.select %39, %35, %15 : vector<8x64xi1>, vector<8x64xf32>
    %c8 = arith.constant 8 : index
    %c0_17 = arith.constant 0 : index
    %41 = vector.load %arg8[%c8, %c0_17] : memref<80x256xf32, #tpu.memory_space<vmem>>, vector<8x256xf32>
    %cst_18 = arith.constant dense<0.000000e+00> : vector<8x256xf32>
    %42 = tpu.matmul %40, %7, %cst_18 {dimension_numbers = #tpu.dot_dimension_numbers<[1], [0], [0], [1], [0, 0, 1, 1], [], []>} : vector<8x64xf32>, vector<64x256xf32>, vector<8x256xf32> -> vector<8x256xf32>
    %43 = arith.addf %41, %42 : vector<8x256xf32>
    %44 = math.tanh %43 : vector<8x256xf32>
    %45 = arith.negf %43 : vector<8x256xf32>
    %46 = math.exp %45 : vector<8x256xf32>
    %cst_19 = arith.constant 1.000000e+00 : f32
    %47 = vector.broadcast %cst_19 : f32 to vector<8x256xf32>
    %48 = arith.addf %47, %46 : vector<8x256xf32>
    %49 = arith.divf %47, %48 : vector<8x256xf32>
    %50 = arith.select %14, %44, %49 : vector<8x256xi1>, vector<8x256xf32>
    %51 = vector.extract_strided_slice %50 {offsets = [0, 0], sizes = [8, 64], strides = [1, 1]} : vector<8x256xf32> to vector<8x64xf32>
    %52 = vector.extract_strided_slice %50 {offsets = [0, 64], sizes = [8, 64], strides = [1, 1]} : vector<8x256xf32> to vector<8x64xf32>
    %53 = vector.extract_strided_slice %50 {offsets = [0, 128], sizes = [8, 64], strides = [1, 1]} : vector<8x256xf32> to vector<8x64xf32>
    %54 = vector.extract_strided_slice %50 {offsets = [0, 192], sizes = [8, 64], strides = [1, 1]} : vector<8x256xf32> to vector<8x64xf32>
    %55 = arith.mulf %52, %33 : vector<8x64xf32>
    %56 = arith.mulf %51, %53 : vector<8x64xf32>
    %57 = arith.addf %55, %56 : vector<8x64xf32>
    %58 = math.tanh %57 : vector<8x64xf32>
    %59 = arith.mulf %54, %58 : vector<8x64xf32>
    %c1_i32 = arith.constant 1 : i32
    %60 = vector.broadcast %c1_i32 : i32 to vector<8x1xi32>
    %61 = arith.cmpi sgt, %8, %60 : vector<8x1xi32>
    %62 = vector.shape_cast %61 : vector<8x1xi1> to vector<8x1xi1>
    %63 = vector.broadcast %62 : vector<8x1xi1> to vector<8x64xi1>
    %64 = arith.select %63, %59, %40 : vector<8x64xi1>, vector<8x64xf32>
    %c16 = arith.constant 16 : index
    %c0_20 = arith.constant 0 : index
    %65 = vector.load %arg8[%c16, %c0_20] : memref<80x256xf32, #tpu.memory_space<vmem>>, vector<8x256xf32>
    %cst_21 = arith.constant dense<0.000000e+00> : vector<8x256xf32>
    %66 = tpu.matmul %64, %7, %cst_21 {dimension_numbers = #tpu.dot_dimension_numbers<[1], [0], [0], [1], [0, 0, 1, 1], [], []>} : vector<8x64xf32>, vector<64x256xf32>, vector<8x256xf32> -> vector<8x256xf32>
    %67 = arith.addf %65, %66 : vector<8x256xf32>
    %68 = math.tanh %67 : vector<8x256xf32>
    %69 = arith.negf %67 : vector<8x256xf32>
    %70 = math.exp %69 : vector<8x256xf32>
    %cst_22 = arith.constant 1.000000e+00 : f32
    %71 = vector.broadcast %cst_22 : f32 to vector<8x256xf32>
    %72 = arith.addf %71, %70 : vector<8x256xf32>
    %73 = arith.divf %71, %72 : vector<8x256xf32>
    %74 = arith.select %14, %68, %73 : vector<8x256xi1>, vector<8x256xf32>
    %75 = vector.extract_strided_slice %74 {offsets = [0, 0], sizes = [8, 64], strides = [1, 1]} : vector<8x256xf32> to vector<8x64xf32>
    %76 = vector.extract_strided_slice %74 {offsets = [0, 64], sizes = [8, 64], strides = [1, 1]} : vector<8x256xf32> to vector<8x64xf32>
    %77 = vector.extract_strided_slice %74 {offsets = [0, 128], sizes = [8, 64], strides = [1, 1]} : vector<8x256xf32> to vector<8x64xf32>
    %78 = vector.extract_strided_slice %74 {offsets = [0, 192], sizes = [8, 64], strides = [1, 1]} : vector<8x256xf32> to vector<8x64xf32>
    %79 = arith.mulf %76, %57 : vector<8x64xf32>
    %80 = arith.mulf %75, %77 : vector<8x64xf32>
    %81 = arith.addf %79, %80 : vector<8x64xf32>
    %82 = math.tanh %81 : vector<8x64xf32>
    %83 = arith.mulf %78, %82 : vector<8x64xf32>
    %c2_i32 = arith.constant 2 : i32
    %84 = vector.broadcast %c2_i32 : i32 to vector<8x1xi32>
    %85 = arith.cmpi sgt, %8, %84 : vector<8x1xi32>
    %86 = vector.shape_cast %85 : vector<8x1xi1> to vector<8x1xi1>
    %87 = vector.broadcast %86 : vector<8x1xi1> to vector<8x64xi1>
    %88 = arith.select %87, %83, %64 : vector<8x64xi1>, vector<8x64xf32>
    %c24 = arith.constant 24 : index
    %c0_23 = arith.constant 0 : index
    %89 = vector.load %arg8[%c24, %c0_23] : memref<80x256xf32, #tpu.memory_space<vmem>>, vector<8x256xf32>
    %cst_24 = arith.constant dense<0.000000e+00> : vector<8x256xf32>
    %90 = tpu.matmul %88, %7, %cst_24 {dimension_numbers = #tpu.dot_dimension_numbers<[1], [0], [0], [1], [0, 0, 1, 1], [], []>} : vector<8x64xf32>, vector<64x256xf32>, vector<8x256xf32> -> vector<8x256xf32>
    %91 = arith.addf %89, %90 : vector<8x256xf32>
    %92 = math.tanh %91 : vector<8x256xf32>
    %93 = arith.negf %91 : vector<8x256xf32>
    %94 = math.exp %93 : vector<8x256xf32>
    %cst_25 = arith.constant 1.000000e+00 : f32
    %95 = vector.broadcast %cst_25 : f32 to vector<8x256xf32>
    %96 = arith.addf %95, %94 : vector<8x256xf32>
    %97 = arith.divf %95, %96 : vector<8x256xf32>
    %98 = arith.select %14, %92, %97 : vector<8x256xi1>, vector<8x256xf32>
    %99 = vector.extract_strided_slice %98 {offsets = [0, 0], sizes = [8, 64], strides = [1, 1]} : vector<8x256xf32> to vector<8x64xf32>
    %100 = vector.extract_strided_slice %98 {offsets = [0, 64], sizes = [8, 64], strides = [1, 1]} : vector<8x256xf32> to vector<8x64xf32>
    %101 = vector.extract_strided_slice %98 {offsets = [0, 128], sizes = [8, 64], strides = [1, 1]} : vector<8x256xf32> to vector<8x64xf32>
    %102 = vector.extract_strided_slice %98 {offsets = [0, 192], sizes = [8, 64], strides = [1, 1]} : vector<8x256xf32> to vector<8x64xf32>
    %103 = arith.mulf %100, %81 : vector<8x64xf32>
    %104 = arith.mulf %99, %101 : vector<8x64xf32>
    %105 = arith.addf %103, %104 : vector<8x64xf32>
    %106 = math.tanh %105 : vector<8x64xf32>
    %107 = arith.mulf %102, %106 : vector<8x64xf32>
    %c3_i32 = arith.constant 3 : i32
    %108 = vector.broadcast %c3_i32 : i32 to vector<8x1xi32>
    %109 = arith.cmpi sgt, %8, %108 : vector<8x1xi32>
    %110 = vector.shape_cast %109 : vector<8x1xi1> to vector<8x1xi1>
    %111 = vector.broadcast %110 : vector<8x1xi1> to vector<8x64xi1>
    %112 = arith.select %111, %107, %88 : vector<8x64xi1>, vector<8x64xf32>
    %c32 = arith.constant 32 : index
    %c0_26 = arith.constant 0 : index
    %113 = vector.load %arg8[%c32, %c0_26] : memref<80x256xf32, #tpu.memory_space<vmem>>, vector<8x256xf32>
    %cst_27 = arith.constant dense<0.000000e+00> : vector<8x256xf32>
    %114 = tpu.matmul %112, %7, %cst_27 {dimension_numbers = #tpu.dot_dimension_numbers<[1], [0], [0], [1], [0, 0, 1, 1], [], []>} : vector<8x64xf32>, vector<64x256xf32>, vector<8x256xf32> -> vector<8x256xf32>
    %115 = arith.addf %113, %114 : vector<8x256xf32>
    %116 = math.tanh %115 : vector<8x256xf32>
    %117 = arith.negf %115 : vector<8x256xf32>
    %118 = math.exp %117 : vector<8x256xf32>
    %cst_28 = arith.constant 1.000000e+00 : f32
    %119 = vector.broadcast %cst_28 : f32 to vector<8x256xf32>
    %120 = arith.addf %119, %118 : vector<8x256xf32>
    %121 = arith.divf %119, %120 : vector<8x256xf32>
    %122 = arith.select %14, %116, %121 : vector<8x256xi1>, vector<8x256xf32>
    %123 = vector.extract_strided_slice %122 {offsets = [0, 0], sizes = [8, 64], strides = [1, 1]} : vector<8x256xf32> to vector<8x64xf32>
    %124 = vector.extract_strided_slice %122 {offsets = [0, 64], sizes = [8, 64], strides = [1, 1]} : vector<8x256xf32> to vector<8x64xf32>
    %125 = vector.extract_strided_slice %122 {offsets = [0, 128], sizes = [8, 64], strides = [1, 1]} : vector<8x256xf32> to vector<8x64xf32>
    %126 = vector.extract_strided_slice %122 {offsets = [0, 192], sizes = [8, 64], strides = [1, 1]} : vector<8x256xf32> to vector<8x64xf32>
    %127 = arith.mulf %124, %105 : vector<8x64xf32>
    %128 = arith.mulf %123, %125 : vector<8x64xf32>
    %129 = arith.addf %127, %128 : vector<8x64xf32>
    %130 = math.tanh %129 : vector<8x64xf32>
    %131 = arith.mulf %126, %130 : vector<8x64xf32>
    %c4_i32 = arith.constant 4 : i32
    %132 = vector.broadcast %c4_i32 : i32 to vector<8x1xi32>
    %133 = arith.cmpi sgt, %8, %132 : vector<8x1xi32>
    %134 = vector.shape_cast %133 : vector<8x1xi1> to vector<8x1xi1>
    %135 = vector.broadcast %134 : vector<8x1xi1> to vector<8x64xi1>
    %136 = arith.select %135, %131, %112 : vector<8x64xi1>, vector<8x64xf32>
    %c40 = arith.constant 40 : index
    %c0_29 = arith.constant 0 : index
    %137 = vector.load %arg8[%c40, %c0_29] : memref<80x256xf32, #tpu.memory_space<vmem>>, vector<8x256xf32>
    %cst_30 = arith.constant dense<0.000000e+00> : vector<8x256xf32>
    %138 = tpu.matmul %136, %7, %cst_30 {dimension_numbers = #tpu.dot_dimension_numbers<[1], [0], [0], [1], [0, 0, 1, 1], [], []>} : vector<8x64xf32>, vector<64x256xf32>, vector<8x256xf32> -> vector<8x256xf32>
    %139 = arith.addf %137, %138 : vector<8x256xf32>
    %140 = math.tanh %139 : vector<8x256xf32>
    %141 = arith.negf %139 : vector<8x256xf32>
    %142 = math.exp %141 : vector<8x256xf32>
    %cst_31 = arith.constant 1.000000e+00 : f32
    %143 = vector.broadcast %cst_31 : f32 to vector<8x256xf32>
    %144 = arith.addf %143, %142 : vector<8x256xf32>
    %145 = arith.divf %143, %144 : vector<8x256xf32>
    %146 = arith.select %14, %140, %145 : vector<8x256xi1>, vector<8x256xf32>
    %147 = vector.extract_strided_slice %146 {offsets = [0, 0], sizes = [8, 64], strides = [1, 1]} : vector<8x256xf32> to vector<8x64xf32>
    %148 = vector.extract_strided_slice %146 {offsets = [0, 64], sizes = [8, 64], strides = [1, 1]} : vector<8x256xf32> to vector<8x64xf32>
    %149 = vector.extract_strided_slice %146 {offsets = [0, 128], sizes = [8, 64], strides = [1, 1]} : vector<8x256xf32> to vector<8x64xf32>
    %150 = vector.extract_strided_slice %146 {offsets = [0, 192], sizes = [8, 64], strides = [1, 1]} : vector<8x256xf32> to vector<8x64xf32>
    %151 = arith.mulf %148, %129 : vector<8x64xf32>
    %152 = arith.mulf %147, %149 : vector<8x64xf32>
    %153 = arith.addf %151, %152 : vector<8x64xf32>
    %154 = math.tanh %153 : vector<8x64xf32>
    %155 = arith.mulf %150, %154 : vector<8x64xf32>
    %c5_i32 = arith.constant 5 : i32
    %156 = vector.broadcast %c5_i32 : i32 to vector<8x1xi32>
    %157 = arith.cmpi sgt, %8, %156 : vector<8x1xi32>
    %158 = vector.shape_cast %157 : vector<8x1xi1> to vector<8x1xi1>
    %159 = vector.broadcast %158 : vector<8x1xi1> to vector<8x64xi1>
    %160 = arith.select %159, %155, %136 : vector<8x64xi1>, vector<8x64xf32>
    %c48 = arith.constant 48 : index
    %c0_32 = arith.constant 0 : index
    %161 = vector.load %arg8[%c48, %c0_32] : memref<80x256xf32, #tpu.memory_space<vmem>>, vector<8x256xf32>
    %cst_33 = arith.constant dense<0.000000e+00> : vector<8x256xf32>
    %162 = tpu.matmul %160, %7, %cst_33 {dimension_numbers = #tpu.dot_dimension_numbers<[1], [0], [0], [1], [0, 0, 1, 1], [], []>} : vector<8x64xf32>, vector<64x256xf32>, vector<8x256xf32> -> vector<8x256xf32>
    %163 = arith.addf %161, %162 : vector<8x256xf32>
    %164 = math.tanh %163 : vector<8x256xf32>
    %165 = arith.negf %163 : vector<8x256xf32>
    %166 = math.exp %165 : vector<8x256xf32>
    %cst_34 = arith.constant 1.000000e+00 : f32
    %167 = vector.broadcast %cst_34 : f32 to vector<8x256xf32>
    %168 = arith.addf %167, %166 : vector<8x256xf32>
    %169 = arith.divf %167, %168 : vector<8x256xf32>
    %170 = arith.select %14, %164, %169 : vector<8x256xi1>, vector<8x256xf32>
    %171 = vector.extract_strided_slice %170 {offsets = [0, 0], sizes = [8, 64], strides = [1, 1]} : vector<8x256xf32> to vector<8x64xf32>
    %172 = vector.extract_strided_slice %170 {offsets = [0, 64], sizes = [8, 64], strides = [1, 1]} : vector<8x256xf32> to vector<8x64xf32>
    %173 = vector.extract_strided_slice %170 {offsets = [0, 128], sizes = [8, 64], strides = [1, 1]} : vector<8x256xf32> to vector<8x64xf32>
    %174 = vector.extract_strided_slice %170 {offsets = [0, 192], sizes = [8, 64], strides = [1, 1]} : vector<8x256xf32> to vector<8x64xf32>
    %175 = arith.mulf %172, %153 : vector<8x64xf32>
    %176 = arith.mulf %171, %173 : vector<8x64xf32>
    %177 = arith.addf %175, %176 : vector<8x64xf32>
    %178 = math.tanh %177 : vector<8x64xf32>
    %179 = arith.mulf %174, %178 : vector<8x64xf32>
    %c6_i32 = arith.constant 6 : i32
    %180 = vector.broadcast %c6_i32 : i32 to vector<8x1xi32>
    %181 = arith.cmpi sgt, %8, %180 : vector<8x1xi32>
    %182 = vector.shape_cast %181 : vector<8x1xi1> to vector<8x1xi1>
    %183 = vector.broadcast %182 : vector<8x1xi1> to vector<8x64xi1>
    %184 = arith.select %183, %179, %160 : vector<8x64xi1>, vector<8x64xf32>
    %c56 = arith.constant 56 : index
    %c0_35 = arith.constant 0 : index
    %185 = vector.load %arg8[%c56, %c0_35] : memref<80x256xf32, #tpu.memory_space<vmem>>, vector<8x256xf32>
    %cst_36 = arith.constant dense<0.000000e+00> : vector<8x256xf32>
    %186 = tpu.matmul %184, %7, %cst_36 {dimension_numbers = #tpu.dot_dimension_numbers<[1], [0], [0], [1], [0, 0, 1, 1], [], []>} : vector<8x64xf32>, vector<64x256xf32>, vector<8x256xf32> -> vector<8x256xf32>
    %187 = arith.addf %185, %186 : vector<8x256xf32>
    %188 = math.tanh %187 : vector<8x256xf32>
    %189 = arith.negf %187 : vector<8x256xf32>
    %190 = math.exp %189 : vector<8x256xf32>
    %cst_37 = arith.constant 1.000000e+00 : f32
    %191 = vector.broadcast %cst_37 : f32 to vector<8x256xf32>
    %192 = arith.addf %191, %190 : vector<8x256xf32>
    %193 = arith.divf %191, %192 : vector<8x256xf32>
    %194 = arith.select %14, %188, %193 : vector<8x256xi1>, vector<8x256xf32>
    %195 = vector.extract_strided_slice %194 {offsets = [0, 0], sizes = [8, 64], strides = [1, 1]} : vector<8x256xf32> to vector<8x64xf32>
    %196 = vector.extract_strided_slice %194 {offsets = [0, 64], sizes = [8, 64], strides = [1, 1]} : vector<8x256xf32> to vector<8x64xf32>
    %197 = vector.extract_strided_slice %194 {offsets = [0, 128], sizes = [8, 64], strides = [1, 1]} : vector<8x256xf32> to vector<8x64xf32>
    %198 = vector.extract_strided_slice %194 {offsets = [0, 192], sizes = [8, 64], strides = [1, 1]} : vector<8x256xf32> to vector<8x64xf32>
    %199 = arith.mulf %196, %177 : vector<8x64xf32>
    %200 = arith.mulf %195, %197 : vector<8x64xf32>
    %201 = arith.addf %199, %200 : vector<8x64xf32>
    %202 = math.tanh %201 : vector<8x64xf32>
    %203 = arith.mulf %198, %202 : vector<8x64xf32>
    %c7_i32 = arith.constant 7 : i32
    %204 = vector.broadcast %c7_i32 : i32 to vector<8x1xi32>
    %205 = arith.cmpi sgt, %8, %204 : vector<8x1xi32>
    %206 = vector.shape_cast %205 : vector<8x1xi1> to vector<8x1xi1>
    %207 = vector.broadcast %206 : vector<8x1xi1> to vector<8x64xi1>
    %208 = arith.select %207, %203, %184 : vector<8x64xi1>, vector<8x64xf32>
    %c64 = arith.constant 64 : index
    %c0_38 = arith.constant 0 : index
    %209 = vector.load %arg8[%c64, %c0_38] : memref<80x256xf32, #tpu.memory_space<vmem>>, vector<8x256xf32>
    %cst_39 = arith.constant dense<0.000000e+00> : vector<8x256xf32>
    %210 = tpu.matmul %208, %7, %cst_39 {dimension_numbers = #tpu.dot_dimension_numbers<[1], [0], [0], [1], [0, 0, 1, 1], [], []>} : vector<8x64xf32>, vector<64x256xf32>, vector<8x256xf32> -> vector<8x256xf32>
    %211 = arith.addf %209, %210 : vector<8x256xf32>
    %212 = math.tanh %211 : vector<8x256xf32>
    %213 = arith.negf %211 : vector<8x256xf32>
    %214 = math.exp %213 : vector<8x256xf32>
    %cst_40 = arith.constant 1.000000e+00 : f32
    %215 = vector.broadcast %cst_40 : f32 to vector<8x256xf32>
    %216 = arith.addf %215, %214 : vector<8x256xf32>
    %217 = arith.divf %215, %216 : vector<8x256xf32>
    %218 = arith.select %14, %212, %217 : vector<8x256xi1>, vector<8x256xf32>
    %219 = vector.extract_strided_slice %218 {offsets = [0, 0], sizes = [8, 64], strides = [1, 1]} : vector<8x256xf32> to vector<8x64xf32>
    %220 = vector.extract_strided_slice %218 {offsets = [0, 64], sizes = [8, 64], strides = [1, 1]} : vector<8x256xf32> to vector<8x64xf32>
    %221 = vector.extract_strided_slice %218 {offsets = [0, 128], sizes = [8, 64], strides = [1, 1]} : vector<8x256xf32> to vector<8x64xf32>
    %222 = vector.extract_strided_slice %218 {offsets = [0, 192], sizes = [8, 64], strides = [1, 1]} : vector<8x256xf32> to vector<8x64xf32>
    %223 = arith.mulf %220, %201 : vector<8x64xf32>
    %224 = arith.mulf %219, %221 : vector<8x64xf32>
    %225 = arith.addf %223, %224 : vector<8x64xf32>
    %226 = math.tanh %225 : vector<8x64xf32>
    %227 = arith.mulf %222, %226 : vector<8x64xf32>
    %c8_i32 = arith.constant 8 : i32
    %228 = vector.broadcast %c8_i32 : i32 to vector<8x1xi32>
    %229 = arith.cmpi sgt, %8, %228 : vector<8x1xi32>
    %230 = vector.shape_cast %229 : vector<8x1xi1> to vector<8x1xi1>
    %231 = vector.broadcast %230 : vector<8x1xi1> to vector<8x64xi1>
    %232 = arith.select %231, %227, %208 : vector<8x64xi1>, vector<8x64xf32>
    %c72 = arith.constant 72 : index
    %c0_41 = arith.constant 0 : index
    %233 = vector.load %arg8[%c72, %c0_41] : memref<80x256xf32, #tpu.memory_space<vmem>>, vector<8x256xf32>
    %cst_42 = arith.constant dense<0.000000e+00> : vector<8x256xf32>
    %234 = tpu.matmul %232, %7, %cst_42 {dimension_numbers = #tpu.dot_dimension_numbers<[1], [0], [0], [1], [0, 0, 1, 1], [], []>} : vector<8x64xf32>, vector<64x256xf32>, vector<8x256xf32> -> vector<8x256xf32>
    %235 = arith.addf %233, %234 : vector<8x256xf32>
    %236 = math.tanh %235 : vector<8x256xf32>
    %237 = arith.negf %235 : vector<8x256xf32>
    %238 = math.exp %237 : vector<8x256xf32>
    %cst_43 = arith.constant 1.000000e+00 : f32
    %239 = vector.broadcast %cst_43 : f32 to vector<8x256xf32>
    %240 = arith.addf %239, %238 : vector<8x256xf32>
    %241 = arith.divf %239, %240 : vector<8x256xf32>
    %242 = arith.select %14, %236, %241 : vector<8x256xi1>, vector<8x256xf32>
    %243 = vector.extract_strided_slice %242 {offsets = [0, 0], sizes = [8, 64], strides = [1, 1]} : vector<8x256xf32> to vector<8x64xf32>
    %244 = vector.extract_strided_slice %242 {offsets = [0, 64], sizes = [8, 64], strides = [1, 1]} : vector<8x256xf32> to vector<8x64xf32>
    %245 = vector.extract_strided_slice %242 {offsets = [0, 128], sizes = [8, 64], strides = [1, 1]} : vector<8x256xf32> to vector<8x64xf32>
    %246 = vector.extract_strided_slice %242 {offsets = [0, 192], sizes = [8, 64], strides = [1, 1]} : vector<8x256xf32> to vector<8x64xf32>
    %247 = arith.mulf %244, %225 : vector<8x64xf32>
    %248 = arith.mulf %243, %245 : vector<8x64xf32>
    %249 = arith.addf %247, %248 : vector<8x64xf32>
    %250 = math.tanh %249 : vector<8x64xf32>
    %251 = arith.mulf %246, %250 : vector<8x64xf32>
    %c9_i32 = arith.constant 9 : i32
    %252 = vector.broadcast %c9_i32 : i32 to vector<8x1xi32>
    %253 = arith.cmpi sgt, %8, %252 : vector<8x1xi32>
    %254 = vector.shape_cast %253 : vector<8x1xi1> to vector<8x1xi1>
    %255 = vector.broadcast %254 : vector<8x1xi1> to vector<8x64xi1>
    %256 = arith.select %255, %251, %232 : vector<8x64xi1>, vector<8x64xf32>
    %c0_44 = arith.constant 0 : index
    %c0_45 = arith.constant 0 : index
    %257 = vector.load %arg5[%c0_44, %c0_45] : memref<1x64xf32, #tpu.memory_space<vmem>>, vector<1x64xf32>
    %258 = vector.broadcast %257 : vector<1x64xf32> to vector<8x64xf32>
    %259 = arith.mulf %256, %258 : vector<8x64xf32>
    %cst_46 = arith.constant dense<0.000000e+00> : vector<8xf32>
    %260 = vector.multi_reduction <add>, %259, %cst_46 [1] : vector<8x64xf32> to vector<8xf32>
    %261 = vector.shape_cast %260 : vector<8xf32> to vector<8x1xf32>
    %c0_47 = arith.constant 0 : index
    %c0_48 = arith.constant 0 : index
    %262 = vector.load %arg6[%c0_47, %c0_48] : memref<1x1xf32, #tpu.memory_space<vmem>>, vector<1x1xf32>
    %263 = vector.broadcast %262 : vector<1x1xf32> to vector<8x1xf32>
    %264 = arith.addf %261, %263 : vector<8x1xf32>
    %c0_49 = arith.constant 0 : index
    %c0_50 = arith.constant 0 : index
    %265 = vector.load %arg7[%c0_49, %c0_50] : memref<8x1xf32, #tpu.memory_space<vmem>>, vector<8x1xf32>
    tpu.vector_store %arg7[%c0_49, %c0_50], %264 {strides = array<i32>} : memref<8x1xf32, #tpu.memory_space<vmem>>, vector<8x1xf32>,
    return
  }
}

</mosaic_0001>

<llo_original>
// kernel: tpu_custom_call.1
$region0: #{tpu_custom_call.1}
  #allocation0 [shape = 'u32[]', space=smem, size = 0x4, offset = 0x4, fixed_abs, tag = 'smem constant byte address 0x4 - core index']
  #allocation1 [shape = 'u32[144,128]{1,0:T(1,128)}', space=vmem, size = 0x12000, scoped, tag = 'internal scratch']
  #allocation2 [shape = 'f32[80,256]{1,0:T(8,128)}', space=vmem, size = 0x14000, scoped, tag = 'scratch operand']
  #allocation3 [shape = 'f32[1,1]{1,0:T(1,128)S(1)}', space=vmem, size = 0x200, scoped, tag = 'scoped memory for tpu_custom_call.1']
  %s0 = inlined_call_operand.vmem [shape: s32[8,1], index: 0, kind: input, shape index: {}]
  %s1 = inlined_call_operand.vmem [shape: f32[80,32], index: 1, kind: input, shape index: {}]
  %s2 = inlined_call_operand.hbm [shape: f32[32,256], index: 2, kind: input, shape index: {}]
  %s3 = inlined_call_operand.vmem [shape: f32[64,256], index: 3, kind: input, shape index: {}]
  %s4 = inlined_call_operand.vmem [shape: f32[1,256], index: 4, kind: input, shape index: {}]
  %s5 = inlined_call_operand.vmem [shape: f32[1,64], index: 5, kind: input, shape index: {}]
  %s6 = inlined_call_operand.<no memory space> [shape: f32[1,1], index: 6, kind: input, shape index: {}]
  %s7 = inlined_call_operand.vmem [shape: f32[8,1], index: 7, kind: output, shape index: {}]
  %s8 = sld [smem:[#allocation0]]
  $region42: #{tpu_custom_call.1} parent=0
    _
  %s10 = ssub.s32 1, %s8
  %s11 = scalar_select 0, %s10, %s8
  %v12 = vstv %s6
  %13 = vst [vmem:[#allocation3] sm:$0x1] %v12
  $region1: #{tpu_custom_call.1} parent=0
    #allocation4 [shape = 'u8[32768]{0}', space=vmem, size = 0x8000, scoped, tag = 'input window, operand 2, single buffered']
    #allocation5 [shape = 's32[1]{0}', space=sflag, size = 0x4, scoped, tag = 'scoped memory for tpu_custom_call.1']
    %14 = vsyncpa [#allocation5], 0
    // Predicated region
    $region2: #{tpu_custom_call.1} parent=1 // pred_check
      _
    $region3: #{tpu_custom_call.1} parent=1 // pred_check_branch
      %16 = sbr.rel (0) target = $region5
    $region4: #{tpu_custom_call.1} parent=1 // pred_region
      _
    $region5: #{tpu_custom_call.1} parent=1 // pred_fallthru
      _
    // Predicated region
    $region6: #{tpu_custom_call.1} parent=1 // pred_check
      _
    $region7: #{tpu_custom_call.1} parent=1 // pred_check_branch
      %18 = sbr.rel (0) target = $region9
    $region8: #{tpu_custom_call.1} parent=1 // pred_region
      _
    $region9: #{tpu_custom_call.1} parent=1 // pred_fallthru
      _
    // Predicated region
    $region10: #{tpu_custom_call.1} parent=1 // pred_check
      _
    $region11: #{tpu_custom_call.1} parent=1 // pred_check_branch
      %20 = sbr.rel (0) target = $region13
    $region12: #{tpu_custom_call.1} parent=1 // pred_region
      %s22 = ssub.s32 1024, 1024
      %23 = vsyncadd [#allocation5], %s22
      %s24 = sshll.u32 [#allocation4], 4
      %s25 = int_to_ptr.vmem [resolvable:$true] %s24
      %30 = dma.hbm_to_vmem [thread:$0]  %s2, 1024, %s25, [#allocation5], 256, 256, 16
    $region13: #{tpu_custom_call.1} parent=1 // pred_fallthru
      _
    // Predicated region
    $region14: #{tpu_custom_call.1} parent=1 // pred_check
      _
    $region15: #{tpu_custom_call.1} parent=1 // pred_check_branch
      %32 = sbr.rel (0) target = $region17
    $region16: #{tpu_custom_call.1} parent=1 // pred_region
      _
    $region17: #{tpu_custom_call.1} parent=1 // pred_fallthru
      _
    // Predicated region
    $region18: #{tpu_custom_call.1} parent=1 // pred_check
      _
    $region19: #{tpu_custom_call.1} parent=1 // pred_check_branch
      %34 = sbr.rel (0) target = $region21
    $region20: #{tpu_custom_call.1} parent=1 // pred_region
      _
    $region21: #{tpu_custom_call.1} parent=1 // pred_fallthru
      _
    // Predicated region
    $region22: #{tpu_custom_call.1} parent=1 // pred_check
      _
    $region23: #{tpu_custom_call.1} parent=1 // pred_check_branch
      %36 = sbr.rel (0) target = $region25
    $region24: #{tpu_custom_call.1} parent=1 // pred_region
      _
    $region25: #{tpu_custom_call.1} parent=1 // pred_fallthru
      _
    // Predicated region
    $region26: #{tpu_custom_call.1} parent=1 // pred_check
      _
    $region27: #{tpu_custom_call.1} parent=1 // pred_check_branch
      %38 = sbr.rel (0) target = $region29
    $region28: #{tpu_custom_call.1} parent=1 // pred_region
      _
    $region29: #{tpu_custom_call.1} parent=1 // pred_fallthru
      _
    // Predicated region
    $region30: #{tpu_custom_call.1} parent=1 // pred_check
      _
    $region31: #{tpu_custom_call.1} parent=1 // pred_check_branch
      %40 = sbr.rel (0) target = $region33
    $region32: #{tpu_custom_call.1} parent=1 // pred_region
      %41 = dma.done [#allocation5], 1024
    $region33: #{tpu_custom_call.1} parent=1 // pred_fallthru
      _
    %v42 = vld [vmem:[%s1] sm:$0xff]
    %v43 = vld [vmem:[%s1 + $0x8] sm:$0xff]
    %v44 = vld [vmem:[%s1 + $0x10] sm:$0xff]
    %v45 = vld [vmem:[%s1 + $0x18] sm:$0xff]
    %v46 = vld [vmem:[%s1 + $0x20] sm:$0xff]
    %v47 = vld [vmem:[%s1 + $0x28] sm:$0xff]
    %v48 = vld [vmem:[%s1 + $0x30] sm:$0xff]
    %v49 = vld [vmem:[%s1 + $0x38] sm:$0xff]
    %v50 = vld [vmem:[%s1 + $0x40] sm:$0xff]
    %v51 = vld [vmem:[%s1 + $0x48] sm:$0xff]
    %v52 = vld [vmem:[#allocation4] sm:$0xff]
    %v53 = vld [vmem:[#allocation4 + $0x8] sm:$0xff]
    %v54 = vld [vmem:[#allocation4 + $0x10] sm:$0xff]
    %v55 = vld [vmem:[#allocation4 + $0x18] sm:$0xff]
    %v56 = vld [vmem:[#allocation4 + $0x20] sm:$0xff]
    %v57 = vld [vmem:[#allocation4 + $0x28] sm:$0xff]
    %v58 = vld [vmem:[#allocation4 + $0x30] sm:$0xff]
    %v59 = vld [vmem:[#allocation4 + $0x38] sm:$0xff]
    %v60 = vld [vmem:[%s4] sm:$0x3]
    %v62 = vlaneseq
    %v63 = vshrl.u32 %v62, 7
    %v64 = vsub.s32 0, %v63
    %v65 = vrot.slane %v60, %v64
    %v66 = vlaneseq
    %v67 = vshrl.u32 %v66, 7
    %v68 = vsub.s32 1, %v67
    %v69 = vrot.slane %v60, %v68
    %vm72 = vcmask 261120
    %v74 = vsel %vm72, %v42, 0
    %v77 = vsel %vm72, %v43, 0
    %v80 = vsel %vm72, %v44, 0
    %v83 = vsel %vm72, %v45, 0
    %v86 = vsel %vm72, %v46, 0
    %v89 = vsel %vm72, %v47, 0
    %v92 = vsel %vm72, %v48, 0
    %v95 = vsel %vm72, %v49, 0
    %v98 = vsel %vm72, %v50, 0
    %v101 = vsel %vm72, %v51, 0
    %103 = vmatprep.subr.mxu0 0.0
    %104 = vmatpush1.msra.mxu0 0.0
    %105 = vmatprep.subr.mxu0 0.0
    %106 = vmatpush1.msra.mxu0 0.0
    %107 = vmatprep.subr.mxu0 0.0
    %108 = vmatpush1.msra.mxu0 0.0
    %109 = vmatprep.subr.mxu0 0.0
    %110 = vmatpush1.msra.mxu0 0.0
    %111 = vmatprep.subr.mxu0 0.0
    %112 = vmatpush1.msra.mxu0 0.0
    %113 = vmatprep.subr.mxu0 0.0
    %114 = vmatpush1.msra.mxu0 0.0
    %115 = vmatprep.subr.mxu0 0.0
    %116 = vmatpush1.msra.mxu0 0.0
    %117 = vmatprep.subr.mxu0 0.0
    %118 = vmatpush1.msra.mxu0 0.0
    %119 = vmatprep.subr.mxu0 0.0
    %120 = vmatpush1.msra.mxu0 0.0
    %121 = vmatprep.subr.mxu0 0.0
    %122 = vmatpush1.msra.mxu0 0.0
    %123 = vmatprep.subr.mxu0 0.0
    %124 = vmatpush1.msra.mxu0 0.0
    %125 = vmatprep.subr.mxu0 0.0
    %126 = vmatpush1.msra.mxu0 0.0
    %127 = vmatprep.subr.mxu0 %v59
    %128 = vmatpush1.msra.mxu0 %v58
    %129 = vmatprep.subr.mxu0 %v57
    %130 = vmatpush1.msra.mxu0 %v56
    %131 = vmatprep.subr.mxu0 %v55
    %132 = vmatpush1.msra.mxu0 %v54
    %133 = vmatprep.subr.mxu0 %v53
    %134 = vmatpush1.msra.mxu0 %v52
    %135 = vmatprep.subr.mxu0 0.0
    %136 = vmatpush2.msra.mxu0 0.0
    %137 = vmatprep.subr.mxu0 0.0
    %138 = vmatpush2.msra.mxu0 0.0
    %139 = vmatprep.subr.mxu0 0.0
    %140 = vmatpush2.msra.mxu0 0.0
    %141 = vmatprep.subr.mxu0 0.0
    %142 = vmatpush2.msra.mxu0 0.0
    %143 = vmatprep.subr.mxu0 0.0
    %144 = vmatpush2.msra.mxu0 0.0
    %145 = vmatprep.subr.mxu0 0.0
    %146 = vmatpush2.msra.mxu0 0.0
    %147 = vmatprep.subr.mxu0 0.0
    %148 = vmatpush2.msra.mxu0 0.0
    %149 = vmatprep.subr.mxu0 0.0
    %150 = vmatpush2.msra.mxu0 0.0
    %151 = vmatprep.subr.mxu0 0.0
    %152 = vmatpush2.msra.mxu0 0.0
    %153 = vmatprep.subr.mxu0 0.0
    %154 = vmatpush2.msra.mxu0 0.0
    %155 = vmatprep.subr.mxu0 0.0
    %156 = vmatpush2.msra.mxu0 0.0
    %157 = vmatprep.subr.mxu0 0.0
    %158 = vmatpush2.msra.mxu0 0.0
    %159 = vmatprep.subr.mxu0 0.0
    %160 = vmatpush2.msra.mxu0 0.0
    %161 = vmatprep.subr.mxu0 0.0
    %162 = vmatpush2.msra.mxu0 0.0
    %163 = vmatprep.subr.mxu0 0.0
    %164 = vmatpush2.msra.mxu0 0.0
    %165 = vmatprep.subr.mxu0 0.0
    %166 = vmatpush2.msra.mxu0 0.0
    %167 = vmatprep.mubr.f32.mxu0 0.0
    %168 = vmatmul.mubr.f32.gmra.mxu0 %v74
    %v169 = vpop.f32.mrf.mxu0
    %v170 = vadd.f32 %v65, %v169
    %v171 = vpop.f32.mrf.mxu0
    %v172 = vadd.f32 %v69, %v171
    %173 = vmatprep.mubr.f32.mxu0 0.0
    %174 = vmatmul.mubr.f32.gmra.mxu0 %v77
    %v175 = vpop.f32.mrf.mxu0
    %v176 = vadd.f32 %v65, %v175
    %v177 = vpop.f32.mrf.mxu0
    %v178 = vadd.f32 %v69, %v177
    %179 = vmatprep.mubr.f32.mxu0 0.0
    %180 = vmatmul.mubr.f32.gmra.mxu0 %v80
    %v181 = vpop.f32.mrf.mxu0
    %v182 = vadd.f32 %v65, %v181
    %v183 = vpop.f32.mrf.mxu0
    %v184 = vadd.f32 %v69, %v183
    %185 = vmatprep.mubr.f32.mxu0 0.0
    %186 = vmatmul.mubr.f32.gmra.mxu0 %v83
    %v187 = vpop.f32.mrf.mxu0
    %v188 = vadd.f32 %v65, %v187
    %v189 = vpop.f32.mrf.mxu0
    %v190 = vadd.f32 %v69, %v189
    %191 = vmatprep.mubr.f32.mxu0 0.0
    %192 = vmatmul.mubr.f32.gmra.mxu0 %v86
    %v193 = vpop.f32.mrf.mxu0
    %v194 = vadd.f32 %v65, %v193
    %v195 = vpop.f32.mrf.mxu0
    %v196 = vadd.f32 %v69, %v195
    %197 = vmatprep.mubr.f32.mxu0 0.0
    %198 = vmatmul.mubr.f32.gmra.mxu0 %v89
    %v199 = vpop.f32.mrf.mxu0
    %v200 = vadd.f32 %v65, %v199
    %v201 = vpop.f32.mrf.mxu0
    %v202 = vadd.f32 %v69, %v201
    %203 = vmatprep.mubr.f32.mxu0 0.0
    %204 = vmatmul.mubr.f32.gmra.mxu0 %v92
    %v205 = vpop.f32.mrf.mxu0
    %v206 = vadd.f32 %v65, %v205
    %v207 = vpop.f32.mrf.mxu0
    %v208 = vadd.f32 %v69, %v207
    %209 = vmatprep.mubr.f32.mxu0 0.0
    %210 = vmatmul.mubr.f32.gmra.mxu0 %v95
    %v211 = vpop.f32.mrf.mxu0
    %v212 = vadd.f32 %v65, %v211
    %v213 = vpop.f32.mrf.mxu0
    %v214 = vadd.f32 %v69, %v213
    %215 = vmatprep.mubr.f32.mxu0 0.0
    %216 = vmatmul.mubr.f32.gmra.mxu0 %v98
    %v217 = vpop.f32.mrf.mxu0
    %v218 = vadd.f32 %v65, %v217
    %v219 = vpop.f32.mrf.mxu0
    %v220 = vadd.f32 %v69, %v219
    %221 = vmatprep.mubr.f32.mxu0 0.0
    %222 = vmatmul.mubr.f32.gmra.mxu0 %v101
    %v223 = vpop.f32.mrf.mxu0
    %v224 = vadd.f32 %v65, %v223
    %v225 = vpop.f32.mrf.mxu0
    %v226 = vadd.f32 %v69, %v225
    %227 = vdwg.mxu0
    %228 = vst [vmem:[#allocation2] sm:$0xff] %v170
    %229 = vst [vmem:[#allocation2 + $0x8] sm:$0xff] %v172
    %230 = vst [vmem:[#allocation2 + $0x10] sm:$0xff] %v176
    %231 = vst [vmem:[#allocation2 + $0x18] sm:$0xff] %v178
    %232 = vst [vmem:[#allocation2 + $0x20] sm:$0xff] %v182
    %233 = vst [vmem:[#allocation2 + $0x28] sm:$0xff] %v184
    %234 = vst [vmem:[#allocation2 + $0x30] sm:$0xff] %v188
    %235 = vst [vmem:[#allocation2 + $0x38] sm:$0xff] %v190
    %236 = vst [vmem:[#allocation2 + $0x40] sm:$0xff] %v194
    %237 = vst [vmem:[#allocation2 + $0x48] sm:$0xff] %v196
    %238 = vst [vmem:[#allocation2 + $0x50] sm:$0xff] %v200
    %239 = vst [vmem:[#allocation2 + $0x58] sm:$0xff] %v202
    %240 = vst [vmem:[#allocation2 + $0x60] sm:$0xff] %v206
    %241 = vst [vmem:[#allocation2 + $0x68] sm:$0xff] %v208
    %242 = vst [vmem:[#allocation2 + $0x70] sm:$0xff] %v212
    %243 = vst [vmem:[#allocation2 + $0x78] sm:$0xff] %v214
    %244 = vst [vmem:[#allocation2 + $0x80] sm:$0xff] %v218
    %245 = vst [vmem:[#allocation2 + $0x88] sm:$0xff] %v220
    %246 = vst [vmem:[#allocation2 + $0x90] sm:$0xff] %v224
    %247 = vst [vmem:[#allocation2 + $0x98] sm:$0xff] %v226
    %v248 = vld [vmem:[%s3] sm:$0xff]
    %v249 = vld [vmem:[%s3 + $0x8] sm:$0xff]
    %v250 = vld [vmem:[%s3 + $0x10] sm:$0xff]
    %v251 = vld [vmem:[%s3 + $0x18] sm:$0xff]
    %v252 = vld [vmem:[%s3 + $0x20] sm:$0xff]
    %v253 = vld [vmem:[%s3 + $0x28] sm:$0xff]
    %v254 = vld [vmem:[%s3 + $0x30] sm:$0xff]
    %v255 = vld [vmem:[%s3 + $0x38] sm:$0xff]
    %v256 = vld [vmem:[%s3 + $0x40] sm:$0xff]
    %v257 = vld [vmem:[%s3 + $0x48] sm:$0xff]
    %v258 = vld [vmem:[%s3 + $0x50] sm:$0xff]
    %v259 = vld [vmem:[%s3 + $0x58] sm:$0xff]
    %v260 = vld [vmem:[%s3 + $0x60] sm:$0xff]
    %v261 = vld [vmem:[%s3 + $0x68] sm:$0xff]
    %v262 = vld [vmem:[%s3 + $0x70] sm:$0xff]
    %v263 = vld [vmem:[%s3 + $0x78] sm:$0xff]
    %v264 = vld [vmem:[%s0] sm:$0xff]
    %v265 = vlaneseq
    %v266 = vand.u32 %v265, 127
    %v267 = vadd.s32 %v266, 128
    %vm268 = vcmp.ge.s32.totalorder %v266, 128
    %vm269 = vcmp.ge.s32.totalorder %v267, 128
    %vm270 = vcmp.lt.s32.totalorder %v266, 192
    %vm271 = vcmp.lt.s32.totalorder %v267, 192
    %vm272 = vmand %vm268, %vm270
    %vm273 = vmand %vm269, %vm271
    %v274 = vld [vmem:[#allocation2] sm:$0xff]
    %v275 = vld [vmem:[#allocation2 + $0x8] sm:$0xff]
    %vm276 = vcmask 523264
    %v278 = vsel %vm276, 0.0, 0
    %280 = vmatprep.subr.mxu0 0.0
    %281 = vmatpush1.msra.mxu0 0.0
    %282 = vmatprep.subr.mxu0 0.0
    %283 = vmatpush1.msra.mxu0 0.0
    %284 = vmatprep.subr.mxu0 0.0
    %285 = vmatpush1.msra.mxu0 0.0
    %286 = vmatprep.subr.mxu0 0.0
    %287 = vmatpush1.msra.mxu0 0.0
    %288 = vmatprep.subr.mxu0 0.0
    %289 = vmatpush1.msra.mxu0 0.0
    %290 = vmatprep.subr.mxu0 0.0
    %291 = vmatpush1.msra.mxu0 0.0
    %292 = vmatprep.subr.mxu0 0.0
    %293 = vmatpush1.msra.mxu0 0.0
    %294 = vmatprep.subr.mxu0 0.0
    %295 = vmatpush1.msra.mxu0 0.0
    %296 = vmatprep.subr.mxu0 %v263
    %297 = vmatpush1.msra.mxu0 %v262
    %298 = vmatprep.subr.mxu0 %v261
    %299 = vmatpush1.msra.mxu0 %v260
    %300 = vmatprep.subr.mxu0 %v259
    %301 = vmatpush1.msra.mxu0 %v258
    %302 = vmatprep.subr.mxu0 %v257
    %303 = vmatpush1.msra.mxu0 %v256
    %304 = vmatprep.subr.mxu0 %v255
    %305 = vmatpush1.msra.mxu0 %v254
    %306 = vmatprep.subr.mxu0 %v253
    %307 = vmatpush1.msra.mxu0 %v252
    %308 = vmatprep.subr.mxu0 %v251
    %309 = vmatpush1.msra.mxu0 %v250
    %310 = vmatprep.subr.mxu0 %v249
    %311 = vmatpush1.msra.mxu0 %v248
    %312 = vmatprep.subr.mxu0 0.0
    %313 = vmatpush2.msra.mxu0 0.0
    %314 = vmatprep.subr.mxu0 0.0
    %315 = vmatpush2.msra.mxu0 0.0
    %316 = vmatprep.subr.mxu0 0.0
    %317 = vmatpush2.msra.mxu0 0.0
    %318 = vmatprep.subr.mxu0 0.0
    %319 = vmatpush2.msra.mxu0 0.0
    %320 = vmatprep.subr.mxu0 0.0
    %321 = vmatpush2.msra.mxu0 0.0
    %322 = vmatprep.subr.mxu0 0.0
    %323 = vmatpush2.msra.mxu0 0.0
    %324 = vmatprep.subr.mxu0 0.0
    %325 = vmatpush2.msra.mxu0 0.0
    %326 = vmatprep.subr.mxu0 0.0
    %327 = vmatpush2.msra.mxu0 0.0
    %328 = vmatprep.subr.mxu0 0.0
    %329 = vmatpush2.msra.mxu0 0.0
    %330 = vmatprep.subr.mxu0 0.0
    %331 = vmatpush2.msra.mxu0 0.0
    %332 = vmatprep.subr.mxu0 0.0
    %333 = vmatpush2.msra.mxu0 0.0
    %334 = vmatprep.subr.mxu0 0.0
    %335 = vmatpush2.msra.mxu0 0.0
    %336 = vmatprep.subr.mxu0 0.0
    %337 = vmatpush2.msra.mxu0 0.0
    %338 = vmatprep.subr.mxu0 0.0
    %339 = vmatpush2.msra.mxu0 0.0
    %340 = vmatprep.subr.mxu0 0.0
    %341 = vmatpush2.msra.mxu0 0.0
    %342 = vmatprep.subr.mxu0 0.0
    %343 = vmatpush2.msra.mxu0 0.0
    %344 = vmatprep.mubr.f32.mxu0 0.0
    %345 = vmatmul.mubr.f32.gmra.mxu0 %v278
    %v346 = vpop.f32.mrf.mxu0
    %v347 = vadd.f32 0.0, %v346
    %v348 = vpop.f32.mrf.mxu0
    %v349 = vadd.f32 0.0, %v348
    %350 = vdwg.mxu0
    %v351 = vadd.f32 %v274, %v347
    %v352 = vadd.f32 %v275, %v349
    %v353 = vtanh.pop %v351
    %v354 = vtanh.pop %v352
    %v355 = vxor.u32 %v351, 2147483648
    %v356 = vxor.u32 %v352, 2147483648
    %v357 = vmul.f32 %v355, 1.442695
    %v358 = vpow.pop %v357
    %v359 = vmul.f32 %v356, 1.442695
    %v360 = vpow.pop %v359
    %v361 = vadd.f32 %v358, 1.0
    %v362 = vadd.f32 %v360, 1.0
    %v363 = vrcp.pop %v361
    %v364 = vmul.f32 1.0, %v363
    %v365 = vrcp.pop %v362
    %v366 = vmul.f32 1.0, %v365
    %v367 = vsel %vm272, %v353, %v364
    %v368 = vsel %vm273, %v354, %v366
    %v369 = vmul.f32 %v367, 0.0
    %v370 = vmul.f32 %v367, %v368
    %372 = vrot.lane.b32.xlu0 %v370, 64
    %v373 = vpop.permute.xlu0 %372
    %v375 = vadd.f32 %v369, %v373
    %v376 = vtanh.pop %v375
    %v377 = vmul.f32 %v368, %v376
    %vm378 = vcmp.gt.s32.totalorder %v264, 0
    %v379 = vsel %vm378, 1, 0
    %380 = vset.pattern.permute.xlu0 0
    %381 = vperm.xlu0 %380, %v379
    %v382 = vpop.permute.xlu0 %381
    %vm383 = vcmp.eq.s32.totalorder %v382, 1
    %v384 = vsel %vm383, %v377, 0.0
    %v385 = vld [vmem:[#allocation2 + $0x10] sm:$0xff]
    %v386 = vld [vmem:[#allocation2 + $0x18] sm:$0xff]
    %388 = vrot.lane.b32.xlu0 %v384, 64
    %v389 = vpop.permute.xlu0 %388
    %v390 = vsel %vm276, %v389, 0
    %392 = vmatprep.subr.mxu0 0.0
    %393 = vmatpush1.msra.mxu0 0.0
    %394 = vmatprep.subr.mxu0 0.0
    %395 = vmatpush1.msra.mxu0 0.0
    %396 = vmatprep.subr.mxu0 0.0
    %397 = vmatpush1.msra.mxu0 0.0
    %398 = vmatprep.subr.mxu0 0.0
    %399 = vmatpush1.msra.mxu0 0.0
    %400 = vmatprep.subr.mxu0 0.0
    %401 = vmatpush1.msra.mxu0 0.0
    %402 = vmatprep.subr.mxu0 0.0
    %403 = vmatpush1.msra.mxu0 0.0
    %404 = vmatprep.subr.mxu0 0.0
    %405 = vmatpush1.msra.mxu0 0.0
    %406 = vmatprep.subr.mxu0 0.0
    %407 = vmatpush1.msra.mxu0 0.0
    %408 = vmatprep.subr.mxu0 %v263
    %409 = vmatpush1.msra.mxu0 %v262
    %410 = vmatprep.subr.mxu0 %v261
    %411 = vmatpush1.msra.mxu0 %v260
    %412 = vmatprep.subr.mxu0 %v259
    %413 = vmatpush1.msra.mxu0 %v258
    %414 = vmatprep.subr.mxu0 %v257
    %415 = vmatpush1.msra.mxu0 %v256
    %416 = vmatprep.subr.mxu0 %v255
    %417 = vmatpush1.msra.mxu0 %v254
    %418 = vmatprep.subr.mxu0 %v253
    %419 = vmatpush1.msra.mxu0 %v252
    %420 = vmatprep.subr.mxu0 %v251
    %421 = vmatpush1.msra.mxu0 %v250
    %422 = vmatprep.subr.mxu0 %v249
    %423 = vmatpush1.msra.mxu0 %v248
    %424 = vmatprep.subr.mxu0 0.0
    %425 = vmatpush2.msra.mxu0 0.0
    %426 = vmatprep.subr.mxu0 0.0
    %427 = vmatpush2.msra.mxu0 0.0
    %428 = vmatprep.subr.mxu0 0.0
    %429 = vmatpush2.msra.mxu0 0.0
    %430 = vmatprep.subr.mxu0 0.0
    %431 = vmatpush2.msra.mxu0 0.0
    %432 = vmatprep.subr.mxu0 0.0
    %433 = vmatpush2.msra.mxu0 0.0
    %434 = vmatprep.subr.mxu0 0.0
    %435 = vmatpush2.msra.mxu0 0.0
    %436 = vmatprep.subr.mxu0 0.0
    %437 = vmatpush2.msra.mxu0 0.0
    %438 = vmatprep.subr.mxu0 0.0
    %439 = vmatpush2.msra.mxu0 0.0
    %440 = vmatprep.subr.mxu0 0.0
    %441 = vmatpush2.msra.mxu0 0.0
    %442 = vmatprep.subr.mxu0 0.0
    %443 = vmatpush2.msra.mxu0 0.0
    %444 = vmatprep.subr.mxu0 0.0
    %445 = vmatpush2.msra.mxu0 0.0
    %446 = vmatprep.subr.mxu0 0.0
    %447 = vmatpush2.msra.mxu0 0.0
    %448 = vmatprep.subr.mxu0 0.0
    %449 = vmatpush2.msra.mxu0 0.0
    %450 = vmatprep.subr.mxu0 0.0
    %451 = vmatpush2.msra.mxu0 0.0
    %452 = vmatprep.subr.mxu0 0.0
    %453 = vmatpush2.msra.mxu0 0.0
    %454 = vmatprep.subr.mxu0 0.0
    %455 = vmatpush2.msra.mxu0 0.0
    %456 = vmatprep.mubr.f32.mxu0 0.0
    %457 = vmatmul.mubr.f32.gmra.mxu0 %v390
    %v458 = vpop.f32.mrf.mxu0
    %v459 = vadd.f32 0.0, %v458
    %v460 = vpop.f32.mrf.mxu0
    %v461 = vadd.f32 0.0, %v460
    %462 = vdwg.mxu0
    %v463 = vadd.f32 %v385, %v459
    %v464 = vadd.f32 %v386, %v461
    %v465 = vtanh.pop %v463
    %v466 = vtanh.pop %v464
    %v467 = vxor.u32 %v463, 2147483648
    %v468 = vxor.u32 %v464, 2147483648
    %v469 = vmul.f32 %v467, 1.442695
    %v470 = vpow.pop %v469
    %v471 = vmul.f32 %v468, 1.442695
    %v472 = vpow.pop %v471
    %v473 = vadd.f32 %v470, 1.0
    %v474 = vadd.f32 %v472, 1.0
    %v475 = vrcp.pop %v473
    %v476 = vmul.f32 1.0, %v475
    %v477 = vrcp.pop %v474
    %v478 = vmul.f32 1.0, %v477
    %v479 = vsel %vm272, %v465, %v476
    %v480 = vsel %vm273, %v466, %v478
    %v481 = vmul.f32 %v479, %v375
    %v482 = vmul.f32 %v479, %v480
    %484 = vrot.lane.b32.xlu0 %v482, 64
    %v485 = vpop.permute.xlu0 %484
    %v487 = vadd.f32 %v481, %v485
    %v488 = vtanh.pop %v487
    %v489 = vmul.f32 %v480, %v488
    %vm490 = vcmp.gt.s32.totalorder %v264, 1
    %v491 = vsel %vm490, 1, 0
    %492 = vset.pattern.permute.xlu0 0
    %493 = vperm.xlu0 %492, %v491
    %v494 = vpop.permute.xlu0 %493
    %vm495 = vcmp.eq.s32.totalorder %v494, 1
    %v496 = vsel %vm495, %v489, %v384
    %v497 = vld [vmem:[#allocation2 + $0x20] sm:$0xff]
    %v498 = vld [vmem:[#allocation2 + $0x28] sm:$0xff]
    %500 = vrot.lane.b32.xlu0 %v496, 64
    %v501 = vpop.permute.xlu0 %500
    %v502 = vsel %vm276, %v501, 0
    %504 = vmatprep.subr.mxu0 0.0
    %505 = vmatpush1.msra.mxu0 0.0
    %506 = vmatprep.subr.mxu0 0.0
    %507 = vmatpush1.msra.mxu0 0.0
    %508 = vmatprep.subr.mxu0 0.0
    %509 = vmatpush1.msra.mxu0 0.0
    %510 = vmatprep.subr.mxu0 0.0
    %511 = vmatpush1.msra.mxu0 0.0
    %512 = vmatprep.subr.mxu0 0.0
    %513 = vmatpush1.msra.mxu0 0.0
    %514 = vmatprep.subr.mxu0 0.0
    %515 = vmatpush1.msra.mxu0 0.0
    %516 = vmatprep.subr.mxu0 0.0
    %517 = vmatpush1.msra.mxu0 0.0
    %518 = vmatprep.subr.mxu0 0.0
    %519 = vmatpush1.msra.mxu0 0.0
    %520 = vmatprep.subr.mxu0 %v263
    %521 = vmatpush1.msra.mxu0 %v262
    %522 = vmatprep.subr.mxu0 %v261
    %523 = vmatpush1.msra.mxu0 %v260
    %524 = vmatprep.subr.mxu0 %v259
    %525 = vmatpush1.msra.mxu0 %v258
    %526 = vmatprep.subr.mxu0 %v257
    %527 = vmatpush1.msra.mxu0 %v256
    %528 = vmatprep.subr.mxu0 %v255
    %529 = vmatpush1.msra.mxu0 %v254
    %530 = vmatprep.subr.mxu0 %v253
    %531 = vmatpush1.msra.mxu0 %v252
    %532 = vmatprep.subr.mxu0 %v251
    %533 = vmatpush1.msra.mxu0 %v250
    %534 = vmatprep.subr.mxu0 %v249
    %535 = vmatpush1.msra.mxu0 %v248
    %536 = vmatprep.subr.mxu0 0.0
    %537 = vmatpush2.msra.mxu0 0.0
    %538 = vmatprep.subr.mxu0 0.0
    %539 = vmatpush2.msra.mxu0 0.0
    %540 = vmatprep.subr.mxu0 0.0
    %541 = vmatpush2.msra.mxu0 0.0
    %542 = vmatprep.subr.mxu0 0.0
    %543 = vmatpush2.msra.mxu0 0.0
    %544 = vmatprep.subr.mxu0 0.0
    %545 = vmatpush2.msra.mxu0 0.0
    %546 = vmatprep.subr.mxu0 0.0
    %547 = vmatpush2.msra.mxu0 0.0
    %548 = vmatprep.subr.mxu0 0.0
    %549 = vmatpush2.msra.mxu0 0.0
    %550 = vmatprep.subr.mxu0 0.0
    %551 = vmatpush2.msra.mxu0 0.0
    %552 = vmatprep.subr.mxu0 0.0
    %553 = vmatpush2.msra.mxu0 0.0
    %554 = vmatprep.subr.mxu0 0.0
    %555 = vmatpush2.msra.mxu0 0.0
    %556 = vmatprep.subr.mxu0 0.0
    %557 = vmatpush2.msra.mxu0 0.0
    %558 = vmatprep.subr.mxu0 0.0
    %559 = vmatpush2.msra.mxu0 0.0
    %560 = vmatprep.subr.mxu0 0.0
    %561 = vmatpush2.msra.mxu0 0.0
    %562 = vmatprep.subr.mxu0 0.0
    %563 = vmatpush2.msra.mxu0 0.0
    %564 = vmatprep.subr.mxu0 0.0
    %565 = vmatpush2.msra.mxu0 0.0
    %566 = vmatprep.subr.mxu0 0.0
    %567 = vmatpush2.msra.mxu0 0.0
    %568 = vmatprep.mubr.f32.mxu0 0.0
    %569 = vmatmul.mubr.f32.gmra.mxu0 %v502
    %v570 = vpop.f32.mrf.mxu0
    %v571 = vadd.f32 0.0, %v570
    %v572 = vpop.f32.mrf.mxu0
    %v573 = vadd.f32 0.0, %v572
    %574 = vdwg.mxu0
    %v575 = vadd.f32 %v497, %v571
    %v576 = vadd.f32 %v498, %v573
    %v577 = vtanh.pop %v575
    %v578 = vtanh.pop %v576
    %v579 = vxor.u32 %v575, 2147483648
    %v580 = vxor.u32 %v576, 2147483648
    %v581 = vmul.f32 %v579, 1.442695
    %v582 = vpow.pop %v581
    %v583 = vmul.f32 %v580, 1.442695
    %v584 = vpow.pop %v583
    %v585 = vadd.f32 %v582, 1.0
    %v586 = vadd.f32 %v584, 1.0
    %v587 = vrcp.pop %v585
    %v588 = vmul.f32 1.0, %v587
    %v589 = vrcp.pop %v586
    %v590 = vmul.f32 1.0, %v589
    %v591 = vsel %vm272, %v577, %v588
    %v592 = vsel %vm273, %v578, %v590
    %v593 = vmul.f32 %v591, %v487
    %v594 = vmul.f32 %v591, %v592
    %596 = vrot.lane.b32.xlu0 %v594, 64
    %v597 = vpop.permute.xlu0 %596
    %v599 = vadd.f32 %v593, %v597
    %v600 = vtanh.pop %v599
    %v601 = vmul.f32 %v592, %v600
    %vm602 = vcmp.gt.s32.totalorder %v264, 2
    %v603 = vsel %vm602, 1, 0
    %604 = vset.pattern.permute.xlu0 0
    %605 = vperm.xlu0 %604, %v603
    %v606 = vpop.permute.xlu0 %605
    %vm607 = vcmp.eq.s32.totalorder %v606, 1
    %v608 = vsel %vm607, %v601, %v496
    %v609 = vld [vmem:[#allocation2 + $0x30] sm:$0xff]
    %v610 = vld [vmem:[#allocation2 + $0x38] sm:$0xff]
    %612 = vrot.lane.b32.xlu0 %v608, 64
    %v613 = vpop.permute.xlu0 %612
    %v614 = vsel %vm276, %v613, 0
    %616 = vmatprep.subr.mxu0 0.0
    %617 = vmatpush1.msra.mxu0 0.0
    %618 = vmatprep.subr.mxu0 0.0
    %619 = vmatpush1.msra.mxu0 0.0
    %620 = vmatprep.subr.mxu0 0.0
    %621 = vmatpush1.msra.mxu0 0.0
    %622 = vmatprep.subr.mxu0 0.0
    %623 = vmatpush1.msra.mxu0 0.0
    %624 = vmatprep.subr.mxu0 0.0
    %625 = vmatpush1.msra.mxu0 0.0
    %626 = vmatprep.subr.mxu0 0.0
    %627 = vmatpush1.msra.mxu0 0.0
    %628 = vmatprep.subr.mxu0 0.0
    %629 = vmatpush1.msra.mxu0 0.0
    %630 = vmatprep.subr.mxu0 0.0
    %631 = vmatpush1.msra.mxu0 0.0
    %632 = vmatprep.subr.mxu0 %v263
    %633 = vmatpush1.msra.mxu0 %v262
    %634 = vmatprep.subr.mxu0 %v261
    %635 = vmatpush1.msra.mxu0 %v260
    %636 = vmatprep.subr.mxu0 %v259
    %637 = vmatpush1.msra.mxu0 %v258
    %638 = vmatprep.subr.mxu0 %v257
    %639 = vmatpush1.msra.mxu0 %v256
    %640 = vmatprep.subr.mxu0 %v255
    %641 = vmatpush1.msra.mxu0 %v254
    %642 = vmatprep.subr.mxu0 %v253
    %643 = vmatpush1.msra.mxu0 %v252
    %644 = vmatprep.subr.mxu0 %v251
    %645 = vmatpush1.msra.mxu0 %v250
    %646 = vmatprep.subr.mxu0 %v249
    %647 = vmatpush1.msra.mxu0 %v248
    %648 = vmatprep.subr.mxu0 0.0
    %649 = vmatpush2.msra.mxu0 0.0
    %650 = vmatprep.subr.mxu0 0.0
    %651 = vmatpush2.msra.mxu0 0.0
    %652 = vmatprep.subr.mxu0 0.0
    %653 = vmatpush2.msra.mxu0 0.0
    %654 = vmatprep.subr.mxu0 0.0
    %655 = vmatpush2.msra.mxu0 0.0
    %656 = vmatprep.subr.mxu0 0.0
    %657 = vmatpush2.msra.mxu0 0.0
    %658 = vmatprep.subr.mxu0 0.0
    %659 = vmatpush2.msra.mxu0 0.0
    %660 = vmatprep.subr.mxu0 0.0
    %661 = vmatpush2.msra.mxu0 0.0
    %662 = vmatprep.subr.mxu0 0.0
    %663 = vmatpush2.msra.mxu0 0.0
    %664 = vmatprep.subr.mxu0 0.0
    %665 = vmatpush2.msra.mxu0 0.0
    %666 = vmatprep.subr.mxu0 0.0
    %667 = vmatpush2.msra.mxu0 0.0
    %668 = vmatprep.subr.mxu0 0.0
    %669 = vmatpush2.msra.mxu0 0.0
    %670 = vmatprep.subr.mxu0 0.0
    %671 = vmatpush2.msra.mxu0 0.0
    %672 = vmatprep.subr.mxu0 0.0
    %673 = vmatpush2.msra.mxu0 0.0
    %674 = vmatprep.subr.mxu0 0.0
    %675 = vmatpush2.msra.mxu0 0.0
    %676 = vmatprep.subr.mxu0 0.0
    %677 = vmatpush2.msra.mxu0 0.0
    %678 = vmatprep.subr.mxu0 0.0
    %679 = vmatpush2.msra.mxu0 0.0
    %680 = vmatprep.mubr.f32.mxu0 0.0
    %681 = vmatmul.mubr.f32.gmra.mxu0 %v614
    %v682 = vpop.f32.mrf.mxu0
    %v683 = vadd.f32 0.0, %v682
    %v684 = vpop.f32.mrf.mxu0
    %v685 = vadd.f32 0.0, %v684
    %686 = vdwg.mxu0
    %v687 = vadd.f32 %v609, %v683
    %v688 = vadd.f32 %v610, %v685
    %v689 = vtanh.pop %v687
    %v690 = vtanh.pop %v688
    %v691 = vxor.u32 %v687, 2147483648
    %v692 = vxor.u32 %v688, 2147483648
    %v693 = vmul.f32 %v691, 1.442695
    %v694 = vpow.pop %v693
    %v695 = vmul.f32 %v692, 1.442695
    %v696 = vpow.pop %v695
    %v697 = vadd.f32 %v694, 1.0
    %v698 = vadd.f32 %v696, 1.0
    %v699 = vrcp.pop %v697
    %v700 = vmul.f32 1.0, %v699
    %v701 = vrcp.pop %v698
    %v702 = vmul.f32 1.0, %v701
    %v703 = vsel %vm272, %v689, %v700
    %v704 = vsel %vm273, %v690, %v702
    %v705 = vmul.f32 %v703, %v599
    %v706 = vmul.f32 %v703, %v704
    %708 = vrot.lane.b32.xlu0 %v706, 64
    %v709 = vpop.permute.xlu0 %708
    %v711 = vadd.f32 %v705, %v709
    %v712 = vtanh.pop %v711
    %v713 = vmul.f32 %v704, %v712
    %vm714 = vcmp.gt.s32.totalorder %v264, 3
    %v715 = vsel %vm714, 1, 0
    %716 = vset.pattern.permute.xlu0 0
    %717 = vperm.xlu0 %716, %v715
    %v718 = vpop.permute.xlu0 %717
    %vm719 = vcmp.eq.s32.totalorder %v718, 1
    %v720 = vsel %vm719, %v713, %v608
    %v721 = vld [vmem:[#allocation2 + $0x40] sm:$0xff]
    %v722 = vld [vmem:[#allocation2 + $0x48] sm:$0xff]
    %724 = vrot.lane.b32.xlu0 %v720, 64
    %v725 = vpop.permute.xlu0 %724
    %v726 = vsel %vm276, %v725, 0
    %728 = vmatprep.subr.mxu0 0.0
    %729 = vmatpush1.msra.mxu0 0.0
    %730 = vmatprep.subr.mxu0 0.0
    %731 = vmatpush1.msra.mxu0 0.0
    %732 = vmatprep.subr.mxu0 0.0
    %733 = vmatpush1.msra.mxu0 0.0
    %734 = vmatprep.subr.mxu0 0.0
    %735 = vmatpush1.msra.mxu0 0.0
    %736 = vmatprep.subr.mxu0 0.0
    %737 = vmatpush1.msra.mxu0 0.0
    %738 = vmatprep.subr.mxu0 0.0
    %739 = vmatpush1.msra.mxu0 0.0
    %740 = vmatprep.subr.mxu0 0.0
    %741 = vmatpush1.msra.mxu0 0.0
    %742 = vmatprep.subr.mxu0 0.0
    %743 = vmatpush1.msra.mxu0 0.0
    %744 = vmatprep.subr.mxu0 %v263
    %745 = vmatpush1.msra.mxu0 %v262
    %746 = vmatprep.subr.mxu0 %v261
    %747 = vmatpush1.msra.mxu0 %v260
    %748 = vmatprep.subr.mxu0 %v259
    %749 = vmatpush1.msra.mxu0 %v258
    %750 = vmatprep.subr.mxu0 %v257
    %751 = vmatpush1.msra.mxu0 %v256
    %752 = vmatprep.subr.mxu0 %v255
    %753 = vmatpush1.msra.mxu0 %v254
    %754 = vmatprep.subr.mxu0 %v253
    %755 = vmatpush1.msra.mxu0 %v252
    %756 = vmatprep.subr.mxu0 %v251
    %757 = vmatpush1.msra.mxu0 %v250
    %758 = vmatprep.subr.mxu0 %v249
    %759 = vmatpush1.msra.mxu0 %v248
    %760 = vmatprep.subr.mxu0 0.0
    %761 = vmatpush2.msra.mxu0 0.0
    %762 = vmatprep.subr.mxu0 0.0
    %763 = vmatpush2.msra.mxu0 0.0
    %764 = vmatprep.subr.mxu0 0.0
    %765 = vmatpush2.msra.mxu0 0.0
    %766 = vmatprep.subr.mxu0 0.0
    %767 = vmatpush2.msra.mxu0 0.0
    %768 = vmatprep.subr.mxu0 0.0
    %769 = vmatpush2.msra.mxu0 0.0
    %770 = vmatprep.subr.mxu0 0.0
    %771 = vmatpush2.msra.mxu0 0.0
    %772 = vmatprep.subr.mxu0 0.0
    %773 = vmatpush2.msra.mxu0 0.0
    %774 = vmatprep.subr.mxu0 0.0
    %775 = vmatpush2.msra.mxu0 0.0
    %776 = vmatprep.subr.mxu0 0.0
    %777 = vmatpush2.msra.mxu0 0.0
    %778 = vmatprep.subr.mxu0 0.0
    %779 = vmatpush2.msra.mxu0 0.0
    %780 = vmatprep.subr.mxu0 0.0
    %781 = vmatpush2.msra.mxu0 0.0
    %782 = vmatprep.subr.mxu0 0.0
    %783 = vmatpush2.msra.mxu0 0.0
    %784 = vmatprep.subr.mxu0 0.0
    %785 = vmatpush2.msra.mxu0 0.0
    %786 = vmatprep.subr.mxu0 0.0
    %787 = vmatpush2.msra.mxu0 0.0
    %788 = vmatprep.subr.mxu0 0.0
    %789 = vmatpush2.msra.mxu0 0.0
    %790 = vmatprep.subr.mxu0 0.0
    %791 = vmatpush2.msra.mxu0 0.0
    %792 = vmatprep.mubr.f32.mxu0 0.0
    %793 = vmatmul.mubr.f32.gmra.mxu0 %v726
    %v794 = vpop.f32.mrf.mxu0
    %v795 = vadd.f32 0.0, %v794
    %v796 = vpop.f32.mrf.mxu0
    %v797 = vadd.f32 0.0, %v796
    %798 = vdwg.mxu0
    %v799 = vadd.f32 %v721, %v795
    %v800 = vadd.f32 %v722, %v797
    %v801 = vtanh.pop %v799
    %v802 = vtanh.pop %v800
    %v803 = vxor.u32 %v799, 2147483648
    %v804 = vxor.u32 %v800, 2147483648
    %v805 = vmul.f32 %v803, 1.442695
    %v806 = vpow.pop %v805
    %v807 = vmul.f32 %v804, 1.442695
    %v808 = vpow.pop %v807
    %v809 = vadd.f32 %v806, 1.0
    %v810 = vadd.f32 %v808, 1.0
    %v811 = vrcp.pop %v809
    %v812 = vmul.f32 1.0, %v811
    %v813 = vrcp.pop %v810
    %v814 = vmul.f32 1.0, %v813
    %v815 = vsel %vm272, %v801, %v812
    %v816 = vsel %vm273, %v802, %v814
    %v817 = vmul.f32 %v815, %v711
    %v818 = vmul.f32 %v815, %v816
    %820 = vrot.lane.b32.xlu0 %v818, 64
    %v821 = vpop.permute.xlu0 %820
    %v823 = vadd.f32 %v817, %v821
    %v824 = vtanh.pop %v823
    %v825 = vmul.f32 %v816, %v824
    %vm826 = vcmp.gt.s32.totalorder %v264, 4
    %v827 = vsel %vm826, 1, 0
    %828 = vset.pattern.permute.xlu0 0
    %829 = vperm.xlu0 %828, %v827
    %v830 = vpop.permute.xlu0 %829
    %vm831 = vcmp.eq.s32.totalorder %v830, 1
    %v832 = vsel %vm831, %v825, %v720
    %v833 = vld [vmem:[#allocation2 + $0x50] sm:$0xff]
    %v834 = vld [vmem:[#allocation2 + $0x58] sm:$0xff]
    %836 = vrot.lane.b32.xlu0 %v832, 64
    %v837 = vpop.permute.xlu0 %836
    %v838 = vsel %vm276, %v837, 0
    %840 = vmatprep.subr.mxu0 0.0
    %841 = vmatpush1.msra.mxu0 0.0
    %842 = vmatprep.subr.mxu0 0.0
    %843 = vmatpush1.msra.mxu0 0.0
    %844 = vmatprep.subr.mxu0 0.0
    %845 = vmatpush1.msra.mxu0 0.0
    %846 = vmatprep.subr.mxu0 0.0
    %847 = vmatpush1.msra.mxu0 0.0
    %848 = vmatprep.subr.mxu0 0.0
    %849 = vmatpush1.msra.mxu0 0.0
    %850 = vmatprep.subr.mxu0 0.0
    %851 = vmatpush1.msra.mxu0 0.0
    %852 = vmatprep.subr.mxu0 0.0
    %853 = vmatpush1.msra.mxu0 0.0
    %854 = vmatprep.subr.mxu0 0.0
    %855 = vmatpush1.msra.mxu0 0.0
    %856 = vmatprep.subr.mxu0 %v263
    %857 = vmatpush1.msra.mxu0 %v262
    %858 = vmatprep.subr.mxu0 %v261
    %859 = vmatpush1.msra.mxu0 %v260
    %860 = vmatprep.subr.mxu0 %v259
    %861 = vmatpush1.msra.mxu0 %v258
    %862 = vmatprep.subr.mxu0 %v257
    %863 = vmatpush1.msra.mxu0 %v256
    %864 = vmatprep.subr.mxu0 %v255
    %865 = vmatpush1.msra.mxu0 %v254
    %866 = vmatprep.subr.mxu0 %v253
    %867 = vmatpush1.msra.mxu0 %v252
    %868 = vmatprep.subr.mxu0 %v251
    %869 = vmatpush1.msra.mxu0 %v250
    %870 = vmatprep.subr.mxu0 %v249
    %871 = vmatpush1.msra.mxu0 %v248
    %872 = vmatprep.subr.mxu0 0.0
    %873 = vmatpush2.msra.mxu0 0.0
    %874 = vmatprep.subr.mxu0 0.0
    %875 = vmatpush2.msra.mxu0 0.0
    %876 = vmatprep.subr.mxu0 0.0
    %877 = vmatpush2.msra.mxu0 0.0
    %878 = vmatprep.subr.mxu0 0.0
    %879 = vmatpush2.msra.mxu0 0.0
    %880 = vmatprep.subr.mxu0 0.0
    %881 = vmatpush2.msra.mxu0 0.0
    %882 = vmatprep.subr.mxu0 0.0
    %883 = vmatpush2.msra.mxu0 0.0
    %884 = vmatprep.subr.mxu0 0.0
    %885 = vmatpush2.msra.mxu0 0.0
    %886 = vmatprep.subr.mxu0 0.0
    %887 = vmatpush2.msra.mxu0 0.0
    %888 = vmatprep.subr.mxu0 0.0
    %889 = vmatpush2.msra.mxu0 0.0
    %890 = vmatprep.subr.mxu0 0.0
    %891 = vmatpush2.msra.mxu0 0.0
    %892 = vmatprep.subr.mxu0 0.0
    %893 = vmatpush2.msra.mxu0 0.0
    %894 = vmatprep.subr.mxu0 0.0
    %895 = vmatpush2.msra.mxu0 0.0
    %896 = vmatprep.subr.mxu0 0.0
    %897 = vmatpush2.msra.mxu0 0.0
    %898 = vmatprep.subr.mxu0 0.0
    %899 = vmatpush2.msra.mxu0 0.0
    %900 = vmatprep.subr.mxu0 0.0
    %901 = vmatpush2.msra.mxu0 0.0
    %902 = vmatprep.subr.mxu0 0.0
    %903 = vmatpush2.msra.mxu0 0.0
    %904 = vmatprep.mubr.f32.mxu0 0.0
    %905 = vmatmul.mubr.f32.gmra.mxu0 %v838
    %v906 = vpop.f32.mrf.mxu0
    %v907 = vadd.f32 0.0, %v906
    %v908 = vpop.f32.mrf.mxu0
    %v909 = vadd.f32 0.0, %v908
    %910 = vdwg.mxu0
    %v911 = vadd.f32 %v833, %v907
    %v912 = vadd.f32 %v834, %v909
    %v913 = vtanh.pop %v911
    %v914 = vtanh.pop %v912
    %v915 = vxor.u32 %v911, 2147483648
    %v916 = vxor.u32 %v912, 2147483648
    %v917 = vmul.f32 %v915, 1.442695
    %v918 = vpow.pop %v917
    %v919 = vmul.f32 %v916, 1.442695
    %v920 = vpow.pop %v919
    %v921 = vadd.f32 %v918, 1.0
    %v922 = vadd.f32 %v920, 1.0
    %v923 = vrcp.pop %v921
    %v924 = vmul.f32 1.0, %v923
    %v925 = vrcp.pop %v922
    %v926 = vmul.f32 1.0, %v925
    %v927 = vsel %vm272, %v913, %v924
    %v928 = vsel %vm273, %v914, %v926
    %v929 = vmul.f32 %v927, %v823
    %v930 = vmul.f32 %v927, %v928
    %932 = vrot.lane.b32.xlu0 %v930, 64
    %v933 = vpop.permute.xlu0 %932
    %v935 = vadd.f32 %v929, %v933
    %v936 = vtanh.pop %v935
    %v937 = vmul.f32 %v928, %v936
    %vm938 = vcmp.gt.s32.totalorder %v264, 5
    %v939 = vsel %vm938, 1, 0
    %940 = vset.pattern.permute.xlu0 0
    %941 = vperm.xlu0 %940, %v939
    %v942 = vpop.permute.xlu0 %941
    %vm943 = vcmp.eq.s32.totalorder %v942, 1
    %v944 = vsel %vm943, %v937, %v832
    %v945 = vld [vmem:[#allocation2 + $0x60] sm:$0xff]
    %v946 = vld [vmem:[#allocation2 + $0x68] sm:$0xff]
    %948 = vrot.lane.b32.xlu0 %v944, 64
    %v949 = vpop.permute.xlu0 %948
    %v950 = vsel %vm276, %v949, 0
    %952 = vmatprep.subr.mxu0 0.0
    %953 = vmatpush1.msra.mxu0 0.0
    %954 = vmatprep.subr.mxu0 0.0
    %955 = vmatpush1.msra.mxu0 0.0
    %956 = vmatprep.subr.mxu0 0.0
    %957 = vmatpush1.msra.mxu0 0.0
    %958 = vmatprep.subr.mxu0 0.0
    %959 = vmatpush1.msra.mxu0 0.0
    %960 = vmatprep.subr.mxu0 0.0
    %961 = vmatpush1.msra.mxu0 0.0
    %962 = vmatprep.subr.mxu0 0.0
    %963 = vmatpush1.msra.mxu0 0.0
    %964 = vmatprep.subr.mxu0 0.0
    %965 = vmatpush1.msra.mxu0 0.0
    %966 = vmatprep.subr.mxu0 0.0
    %967 = vmatpush1.msra.mxu0 0.0
    %968 = vmatprep.subr.mxu0 %v263
    %969 = vmatpush1.msra.mxu0 %v262
    %970 = vmatprep.subr.mxu0 %v261
    %971 = vmatpush1.msra.mxu0 %v260
    %972 = vmatprep.subr.mxu0 %v259
    %973 = vmatpush1.msra.mxu0 %v258
    %974 = vmatprep.subr.mxu0 %v257
    %975 = vmatpush1.msra.mxu0 %v256
    %976 = vmatprep.subr.mxu0 %v255
    %977 = vmatpush1.msra.mxu0 %v254
    %978 = vmatprep.subr.mxu0 %v253
    %979 = vmatpush1.msra.mxu0 %v252
    %980 = vmatprep.subr.mxu0 %v251
    %981 = vmatpush1.msra.mxu0 %v250
    %982 = vmatprep.subr.mxu0 %v249
    %983 = vmatpush1.msra.mxu0 %v248
    %984 = vmatprep.subr.mxu0 0.0
    %985 = vmatpush2.msra.mxu0 0.0
    %986 = vmatprep.subr.mxu0 0.0
    %987 = vmatpush2.msra.mxu0 0.0
    %988 = vmatprep.subr.mxu0 0.0
    %989 = vmatpush2.msra.mxu0 0.0
    %990 = vmatprep.subr.mxu0 0.0
    %991 = vmatpush2.msra.mxu0 0.0
    %992 = vmatprep.subr.mxu0 0.0
    %993 = vmatpush2.msra.mxu0 0.0
    %994 = vmatprep.subr.mxu0 0.0
    %995 = vmatpush2.msra.mxu0 0.0
    %996 = vmatprep.subr.mxu0 0.0
    %997 = vmatpush2.msra.mxu0 0.0
    %998 = vmatprep.subr.mxu0 0.0
    %999 = vmatpush2.msra.mxu0 0.0
    %1000 = vmatprep.subr.mxu0 0.0
    %1001 = vmatpush2.msra.mxu0 0.0
    %1002 = vmatprep.subr.mxu0 0.0
    %1003 = vmatpush2.msra.mxu0 0.0
    %1004 = vmatprep.subr.mxu0 0.0
    %1005 = vmatpush2.msra.mxu0 0.0
    %1006 = vmatprep.subr.mxu0 0.0
    %1007 = vmatpush2.msra.mxu0 0.0
    %1008 = vmatprep.subr.mxu0 0.0
    %1009 = vmatpush2.msra.mxu0 0.0
    %1010 = vmatprep.subr.mxu0 0.0
    %1011 = vmatpush2.msra.mxu0 0.0
    %1012 = vmatprep.subr.mxu0 0.0
    %1013 = vmatpush2.msra.mxu0 0.0
    %1014 = vmatprep.subr.mxu0 0.0
    %1015 = vmatpush2.msra.mxu0 0.0
    %1016 = vmatprep.mubr.f32.mxu0 0.0
    %1017 = vmatmul.mubr.f32.gmra.mxu0 %v950
    %v1018 = vpop.f32.mrf.mxu0
    %v1019 = vadd.f32 0.0, %v1018
    %v1020 = vpop.f32.mrf.mxu0
    %v1021 = vadd.f32 0.0, %v1020
    %1022 = vdwg.mxu0
    %v1023 = vadd.f32 %v945, %v1019
    %v1024 = vadd.f32 %v946, %v1021
    %v1025 = vtanh.pop %v1023
    %v1026 = vtanh.pop %v1024
    %v1027 = vxor.u32 %v1023, 2147483648
    %v1028 = vxor.u32 %v1024, 2147483648
    %v1029 = vmul.f32 %v1027, 1.442695
    %v1030 = vpow.pop %v1029
    %v1031 = vmul.f32 %v1028, 1.442695
    %v1032 = vpow.pop %v1031
    %v1033 = vadd.f32 %v1030, 1.0
    %v1034 = vadd.f32 %v1032, 1.0
    %v1035 = vrcp.pop %v1033
    %v1036 = vmul.f32 1.0, %v1035
    %v1037 = vrcp.pop %v1034
    %v1038 = vmul.f32 1.0, %v1037
    %v1039 = vsel %vm272, %v1025, %v1036
    %v1040 = vsel %vm273, %v1026, %v1038
    %v1041 = vmul.f32 %v1039, %v935
    %v1042 = vmul.f32 %v1039, %v1040
    %1044 = vrot.lane.b32.xlu0 %v1042, 64
    %v1045 = vpop.permute.xlu0 %1044
    %v1047 = vadd.f32 %v1041, %v1045
    %v1048 = vtanh.pop %v1047
    %v1049 = vmul.f32 %v1040, %v1048
    %vm1050 = vcmp.gt.s32.totalorder %v264, 6
    %v1051 = vsel %vm1050, 1, 0
    %1052 = vset.pattern.permute.xlu0 0
    %1053 = vperm.xlu0 %1052, %v1051
    %v1054 = vpop.permute.xlu0 %1053
    %vm1055 = vcmp.eq.s32.totalorder %v1054, 1
    %v1056 = vsel %vm1055, %v1049, %v944
    %v1057 = vld [vmem:[#allocation2 + $0x70] sm:$0xff]
    %v1058 = vld [vmem:[#allocation2 + $0x78] sm:$0xff]
    %1060 = vrot.lane.b32.xlu0 %v1056, 64
    %v1061 = vpop.permute.xlu0 %1060
    %v1062 = vsel %vm276, %v1061, 0
    %1064 = vmatprep.subr.mxu0 0.0
    %1065 = vmatpush1.msra.mxu0 0.0
    %1066 = vmatprep.subr.mxu0 0.0
    %1067 = vmatpush1.msra.mxu0 0.0
    %1068 = vmatprep.subr.mxu0 0.0
    %1069 = vmatpush1.msra.mxu0 0.0
    %1070 = vmatprep.subr.mxu0 0.0
    %1071 = vmatpush1.msra.mxu0 0.0
    %1072 = vmatprep.subr.mxu0 0.0
    %1073 = vmatpush1.msra.mxu0 0.0
    %1074 = vmatprep.subr.mxu0 0.0
    %1075 = vmatpush1.msra.mxu0 0.0
    %1076 = vmatprep.subr.mxu0 0.0
    %1077 = vmatpush1.msra.mxu0 0.0
    %1078 = vmatprep.subr.mxu0 0.0
    %1079 = vmatpush1.msra.mxu0 0.0
    %1080 = vmatprep.subr.mxu0 %v263
    %1081 = vmatpush1.msra.mxu0 %v262
    %1082 = vmatprep.subr.mxu0 %v261
    %1083 = vmatpush1.msra.mxu0 %v260
    %1084 = vmatprep.subr.mxu0 %v259
    %1085 = vmatpush1.msra.mxu0 %v258
    %1086 = vmatprep.subr.mxu0 %v257
    %1087 = vmatpush1.msra.mxu0 %v256
    %1088 = vmatprep.subr.mxu0 %v255
    %1089 = vmatpush1.msra.mxu0 %v254
    %1090 = vmatprep.subr.mxu0 %v253
    %1091 = vmatpush1.msra.mxu0 %v252
    %1092 = vmatprep.subr.mxu0 %v251
    %1093 = vmatpush1.msra.mxu0 %v250
    %1094 = vmatprep.subr.mxu0 %v249
    %1095 = vmatpush1.msra.mxu0 %v248
    %1096 = vmatprep.subr.mxu0 0.0
    %1097 = vmatpush2.msra.mxu0 0.0
    %1098 = vmatprep.subr.mxu0 0.0
    %1099 = vmatpush2.msra.mxu0 0.0
    %1100 = vmatprep.subr.mxu0 0.0
    %1101 = vmatpush2.msra.mxu0 0.0
    %1102 = vmatprep.subr.mxu0 0.0
    %1103 = vmatpush2.msra.mxu0 0.0
    %1104 = vmatprep.subr.mxu0 0.0
    %1105 = vmatpush2.msra.mxu0 0.0
    %1106 = vmatprep.subr.mxu0 0.0
    %1107 = vmatpush2.msra.mxu0 0.0
    %1108 = vmatprep.subr.mxu0 0.0
    %1109 = vmatpush2.msra.mxu0 0.0
    %1110 = vmatprep.subr.mxu0 0.0
    %1111 = vmatpush2.msra.mxu0 0.0
    %1112 = vmatprep.subr.mxu0 0.0
    %1113 = vmatpush2.msra.mxu0 0.0
    %1114 = vmatprep.subr.mxu0 0.0
    %1115 = vmatpush2.msra.mxu0 0.0
    %1116 = vmatprep.subr.mxu0 0.0
    %1117 = vmatpush2.msra.mxu0 0.0
    %1118 = vmatprep.subr.mxu0 0.0
    %1119 = vmatpush2.msra.mxu0 0.0
    %1120 = vmatprep.subr.mxu0 0.0
    %1121 = vmatpush2.msra.mxu0 0.0
    %1122 = vmatprep.subr.mxu0 0.0
    %1123 = vmatpush2.msra.mxu0 0.0
    %1124 = vmatprep.subr.mxu0 0.0
    %1125 = vmatpush2.msra.mxu0 0.0
    %1126 = vmatprep.subr.mxu0 0.0
    %1127 = vmatpush2.msra.mxu0 0.0
    %1128 = vmatprep.mubr.f32.mxu0 0.0
    %1129 = vmatmul.mubr.f32.gmra.mxu0 %v1062
    %v1130 = vpop.f32.mrf.mxu0
    %v1131 = vadd.f32 0.0, %v1130
    %v1132 = vpop.f32.mrf.mxu0
    %v1133 = vadd.f32 0.0, %v1132
    %1134 = vdwg.mxu0
    %v1135 = vadd.f32 %v1057, %v1131
    %v1136 = vadd.f32 %v1058, %v1133
    %v1137 = vtanh.pop %v1135
    %v1138 = vtanh.pop %v1136
    %v1139 = vxor.u32 %v1135, 2147483648
    %v1140 = vxor.u32 %v1136, 2147483648
    %v1141 = vmul.f32 %v1139, 1.442695
    %v1142 = vpow.pop %v1141
    %v1143 = vmul.f32 %v1140, 1.442695
    %v1144 = vpow.pop %v1143
    %v1145 = vadd.f32 %v1142, 1.0
    %v1146 = vadd.f32 %v1144, 1.0
    %v1147 = vrcp.pop %v1145
    %v1148 = vmul.f32 1.0, %v1147
    %v1149 = vrcp.pop %v1146
    %v1150 = vmul.f32 1.0, %v1149
    %v1151 = vsel %vm272, %v1137, %v1148
    %v1152 = vsel %vm273, %v1138, %v1150
    %v1153 = vmul.f32 %v1151, %v1047
    %v1154 = vmul.f32 %v1151, %v1152
    %1156 = vrot.lane.b32.xlu0 %v1154, 64
    %v1157 = vpop.permute.xlu0 %1156
    %v1159 = vadd.f32 %v1153, %v1157
    %v1160 = vtanh.pop %v1159
    %v1161 = vmul.f32 %v1152, %v1160
    %vm1162 = vcmp.gt.s32.totalorder %v264, 7
    %v1163 = vsel %vm1162, 1, 0
    %1164 = vset.pattern.permute.xlu0 0
    %1165 = vperm.xlu0 %1164, %v1163
    %v1166 = vpop.permute.xlu0 %1165
    %vm1167 = vcmp.eq.s32.totalorder %v1166, 1
    %v1168 = vsel %vm1167, %v1161, %v1056
    %v1169 = vld [vmem:[#allocation2 + $0x80] sm:$0xff]
    %v1170 = vld [vmem:[#allocation2 + $0x88] sm:$0xff]
    %1172 = vrot.lane.b32.xlu0 %v1168, 64
    %v1173 = vpop.permute.xlu0 %1172
    %v1174 = vsel %vm276, %v1173, 0
    %1176 = vmatprep.subr.mxu0 0.0
    %1177 = vmatpush1.msra.mxu0 0.0
    %1178 = vmatprep.subr.mxu0 0.0
    %1179 = vmatpush1.msra.mxu0 0.0
    %1180 = vmatprep.subr.mxu0 0.0
    %1181 = vmatpush1.msra.mxu0 0.0
    %1182 = vmatprep.subr.mxu0 0.0
    %1183 = vmatpush1.msra.mxu0 0.0
    %1184 = vmatprep.subr.mxu0 0.0
    %1185 = vmatpush1.msra.mxu0 0.0
    %1186 = vmatprep.subr.mxu0 0.0
    %1187 = vmatpush1.msra.mxu0 0.0
    %1188 = vmatprep.subr.mxu0 0.0
    %1189 = vmatpush1.msra.mxu0 0.0
    %1190 = vmatprep.subr.mxu0 0.0
    %1191 = vmatpush1.msra.mxu0 0.0
    %1192 = vmatprep.subr.mxu0 %v263
    %1193 = vmatpush1.msra.mxu0 %v262
    %1194 = vmatprep.subr.mxu0 %v261
    %1195 = vmatpush1.msra.mxu0 %v260
    %1196 = vmatprep.subr.mxu0 %v259
    %1197 = vmatpush1.msra.mxu0 %v258
    %1198 = vmatprep.subr.mxu0 %v257
    %1199 = vmatpush1.msra.mxu0 %v256
    %1200 = vmatprep.subr.mxu0 %v255
    %1201 = vmatpush1.msra.mxu0 %v254
    %1202 = vmatprep.subr.mxu0 %v253
    %1203 = vmatpush1.msra.mxu0 %v252
    %1204 = vmatprep.subr.mxu0 %v251
    %1205 = vmatpush1.msra.mxu0 %v250
    %1206 = vmatprep.subr.mxu0 %v249
    %1207 = vmatpush1.msra.mxu0 %v248
    %1208 = vmatprep.subr.mxu0 0.0
    %1209 = vmatpush2.msra.mxu0 0.0
    %1210 = vmatprep.subr.mxu0 0.0
    %1211 = vmatpush2.msra.mxu0 0.0
    %1212 = vmatprep.subr.mxu0 0.0
    %1213 = vmatpush2.msra.mxu0 0.0
    %1214 = vmatprep.subr.mxu0 0.0
    %1215 = vmatpush2.msra.mxu0 0.0
    %1216 = vmatprep.subr.mxu0 0.0
    %1217 = vmatpush2.msra.mxu0 0.0
    %1218 = vmatprep.subr.mxu0 0.0
    %1219 = vmatpush2.msra.mxu0 0.0
    %1220 = vmatprep.subr.mxu0 0.0
    %1221 = vmatpush2.msra.mxu0 0.0
    %1222 = vmatprep.subr.mxu0 0.0
    %1223 = vmatpush2.msra.mxu0 0.0
    %1224 = vmatprep.subr.mxu0 0.0
    %1225 = vmatpush2.msra.mxu0 0.0
    %1226 = vmatprep.subr.mxu0 0.0
    %1227 = vmatpush2.msra.mxu0 0.0
    %1228 = vmatprep.subr.mxu0 0.0
    %1229 = vmatpush2.msra.mxu0 0.0
    %1230 = vmatprep.subr.mxu0 0.0
    %1231 = vmatpush2.msra.mxu0 0.0
    %1232 = vmatprep.subr.mxu0 0.0
    %1233 = vmatpush2.msra.mxu0 0.0
    %1234 = vmatprep.subr.mxu0 0.0
    %1235 = vmatpush2.msra.mxu0 0.0
    %1236 = vmatprep.subr.mxu0 0.0
    %1237 = vmatpush2.msra.mxu0 0.0
    %1238 = vmatprep.subr.mxu0 0.0
    %1239 = vmatpush2.msra.mxu0 0.0
    %1240 = vmatprep.mubr.f32.mxu0 0.0
    %1241 = vmatmul.mubr.f32.gmra.mxu0 %v1174
    %v1242 = vpop.f32.mrf.mxu0
    %v1243 = vadd.f32 0.0, %v1242
    %v1244 = vpop.f32.mrf.mxu0
    %v1245 = vadd.f32 0.0, %v1244
    %1246 = vdwg.mxu0
    %v1247 = vadd.f32 %v1169, %v1243
    %v1248 = vadd.f32 %v1170, %v1245
    %v1249 = vtanh.pop %v1247
    %v1250 = vtanh.pop %v1248
    %v1251 = vxor.u32 %v1247, 2147483648
    %v1252 = vxor.u32 %v1248, 2147483648
    %v1253 = vmul.f32 %v1251, 1.442695
    %v1254 = vpow.pop %v1253
    %v1255 = vmul.f32 %v1252, 1.442695
    %v1256 = vpow.pop %v1255
    %v1257 = vadd.f32 %v1254, 1.0
    %v1258 = vadd.f32 %v1256, 1.0
    %v1259 = vrcp.pop %v1257
    %v1260 = vmul.f32 1.0, %v1259
    %v1261 = vrcp.pop %v1258
    %v1262 = vmul.f32 1.0, %v1261
    %v1263 = vsel %vm272, %v1249, %v1260
    %v1264 = vsel %vm273, %v1250, %v1262
    %v1265 = vmul.f32 %v1263, %v1159
    %v1266 = vmul.f32 %v1263, %v1264
    %1268 = vrot.lane.b32.xlu0 %v1266, 64
    %v1269 = vpop.permute.xlu0 %1268
    %v1271 = vadd.f32 %v1265, %v1269
    %v1272 = vtanh.pop %v1271
    %v1273 = vmul.f32 %v1264, %v1272
    %vm1274 = vcmp.gt.s32.totalorder %v264, 8
    %v1275 = vsel %vm1274, 1, 0
    %1276 = vset.pattern.permute.xlu0 0
    %1277 = vperm.xlu0 %1276, %v1275
    %v1278 = vpop.permute.xlu0 %1277
    %vm1279 = vcmp.eq.s32.totalorder %v1278, 1
    %v1280 = vsel %vm1279, %v1273, %v1168
    %v1281 = vld [vmem:[#allocation2 + $0x90] sm:$0xff]
    %v1282 = vld [vmem:[#allocation2 + $0x98] sm:$0xff]
    %1284 = vrot.lane.b32.xlu0 %v1280, 64
    %v1285 = vpop.permute.xlu0 %1284
    %v1286 = vsel %vm276, %v1285, 0
    %1288 = vmatprep.subr.mxu0 0.0
    %1289 = vmatpush1.msra.mxu0 0.0
    %1290 = vmatprep.subr.mxu0 0.0
    %1291 = vmatpush1.msra.mxu0 0.0
    %1292 = vmatprep.subr.mxu0 0.0
    %1293 = vmatpush1.msra.mxu0 0.0
    %1294 = vmatprep.subr.mxu0 0.0
    %1295 = vmatpush1.msra.mxu0 0.0
    %1296 = vmatprep.subr.mxu0 0.0
    %1297 = vmatpush1.msra.mxu0 0.0
    %1298 = vmatprep.subr.mxu0 0.0
    %1299 = vmatpush1.msra.mxu0 0.0
    %1300 = vmatprep.subr.mxu0 0.0
    %1301 = vmatpush1.msra.mxu0 0.0
    %1302 = vmatprep.subr.mxu0 0.0
    %1303 = vmatpush1.msra.mxu0 0.0
    %1304 = vmatprep.subr.mxu0 %v263
    %1305 = vmatpush1.msra.mxu0 %v262
    %1306 = vmatprep.subr.mxu0 %v261
    %1307 = vmatpush1.msra.mxu0 %v260
    %1308 = vmatprep.subr.mxu0 %v259
    %1309 = vmatpush1.msra.mxu0 %v258
    %1310 = vmatprep.subr.mxu0 %v257
    %1311 = vmatpush1.msra.mxu0 %v256
    %1312 = vmatprep.subr.mxu0 %v255
    %1313 = vmatpush1.msra.mxu0 %v254
    %1314 = vmatprep.subr.mxu0 %v253
    %1315 = vmatpush1.msra.mxu0 %v252
    %1316 = vmatprep.subr.mxu0 %v251
    %1317 = vmatpush1.msra.mxu0 %v250
    %1318 = vmatprep.subr.mxu0 %v249
    %1319 = vmatpush1.msra.mxu0 %v248
    %1320 = vmatprep.subr.mxu0 0.0
    %1321 = vmatpush2.msra.mxu0 0.0
    %1322 = vmatprep.subr.mxu0 0.0
    %1323 = vmatpush2.msra.mxu0 0.0
    %1324 = vmatprep.subr.mxu0 0.0
    %1325 = vmatpush2.msra.mxu0 0.0
    %1326 = vmatprep.subr.mxu0 0.0
    %1327 = vmatpush2.msra.mxu0 0.0
    %1328 = vmatprep.subr.mxu0 0.0
    %1329 = vmatpush2.msra.mxu0 0.0
    %1330 = vmatprep.subr.mxu0 0.0
    %1331 = vmatpush2.msra.mxu0 0.0
    %1332 = vmatprep.subr.mxu0 0.0
    %1333 = vmatpush2.msra.mxu0 0.0
    %1334 = vmatprep.subr.mxu0 0.0
    %1335 = vmatpush2.msra.mxu0 0.0
    %1336 = vmatprep.subr.mxu0 0.0
    %1337 = vmatpush2.msra.mxu0 0.0
    %1338 = vmatprep.subr.mxu0 0.0
    %1339 = vmatpush2.msra.mxu0 0.0
    %1340 = vmatprep.subr.mxu0 0.0
    %1341 = vmatpush2.msra.mxu0 0.0
    %1342 = vmatprep.subr.mxu0 0.0
    %1343 = vmatpush2.msra.mxu0 0.0
    %1344 = vmatprep.subr.mxu0 0.0
    %1345 = vmatpush2.msra.mxu0 0.0
    %1346 = vmatprep.subr.mxu0 0.0
    %1347 = vmatpush2.msra.mxu0 0.0
    %1348 = vmatprep.subr.mxu0 0.0
    %1349 = vmatpush2.msra.mxu0 0.0
    %1350 = vmatprep.subr.mxu0 0.0
    %1351 = vmatpush2.msra.mxu0 0.0
    %1352 = vmatprep.mubr.f32.mxu0 0.0
    %1353 = vmatmul.mubr.f32.gmra.mxu0 %v1286
    %v1354 = vpop.f32.mrf.mxu0
    %v1355 = vadd.f32 0.0, %v1354
    %v1356 = vpop.f32.mrf.mxu0
    %v1357 = vadd.f32 0.0, %v1356
    %1358 = vdwg.mxu0
    %v1359 = vadd.f32 %v1281, %v1355
    %v1360 = vadd.f32 %v1282, %v1357
    %v1361 = vtanh.pop %v1359
    %v1362 = vtanh.pop %v1360
    %v1363 = vxor.u32 %v1359, 2147483648
    %v1364 = vxor.u32 %v1360, 2147483648
    %v1365 = vmul.f32 %v1363, 1.442695
    %v1366 = vpow.pop %v1365
    %v1367 = vmul.f32 %v1364, 1.442695
    %v1368 = vpow.pop %v1367
    %v1369 = vadd.f32 %v1366, 1.0
    %v1370 = vadd.f32 %v1368, 1.0
    %v1371 = vrcp.pop %v1369
    %v1372 = vmul.f32 1.0, %v1371
    %v1373 = vrcp.pop %v1370
    %v1374 = vmul.f32 1.0, %v1373
    %v1375 = vsel %vm272, %v1361, %v1372
    %v1376 = vsel %vm273, %v1362, %v1374
    %v1377 = vmul.f32 %v1375, %v1271
    %v1378 = vmul.f32 %v1375, %v1376
    %1380 = vrot.lane.b32.xlu0 %v1378, 64
    %v1381 = vpop.permute.xlu0 %1380
    %v1383 = vadd.f32 %v1377, %v1381
    %v1384 = vtanh.pop %v1383
    %v1385 = vmul.f32 %v1376, %v1384
    %vm1386 = vcmp.gt.s32.totalorder %v264, 9
    %v1387 = vsel %vm1386, 1, 0
    %1388 = vset.pattern.permute.xlu0 0
    %1389 = vperm.xlu0 %1388, %v1387
    %v1390 = vpop.permute.xlu0 %1389
    %vm1391 = vcmp.eq.s32.totalorder %v1390, 1
    %v1392 = vsel %vm1391, %v1385, %v1280
    %v1393 = vld [vmem:[%s5] sm:$0x1]
    %v1395 = vlaneseq
    %v1396 = vshrl.u32 %v1395, 7
    %v1397 = vsub.s32 0, %v1396
    %v1398 = vrot.slane %v1393, %v1397
    %1399 = vrot.lane.b32.xlu0 %v1398, 64
    %v1400 = vpop.permute.xlu0 %1399
    %v1402 = vmul.f32 %v1392, %v1400
    %1404 = vrot.lane.b32.xlu0 %v1402, 64
    %v1405 = vpop.permute.xlu0 %1404
    %v1407 = vsel %vm276, %v1405, 0.0
    %1408 = vadd.xlane.f32.xlu0 %v1407
    %v1409 = vpop.xlane.xlu0 %1408
    %v1410 = vld [vmem:[#allocation3] sm:$0x1]
    %v1412 = vlaneseq
    %v1413 = vshrl.u32 %v1412, 7
    %v1414 = vsub.s32 0, %v1413
    %v1415 = vrot.slane %v1410, %v1414
    %v1417 = vadd.f32 %v1409, %v1415
    %vm1418 = vcmask 7168
    %1419 = vst.msk [vmem:[%s7] sm:$0xff] %vm1418, %v1417
    // Predicated region
    $region34: #{tpu_custom_call.1} parent=1 // pred_check
      _
    $region35: #{tpu_custom_call.1} parent=1 // pred_check_branch
      %1421 = sbr.rel (0) target = $region37
    $region36: #{tpu_custom_call.1} parent=1 // pred_region
      _
    $region37: #{tpu_custom_call.1} parent=1 // pred_fallthru
      _
    // Predicated region
    $region38: #{tpu_custom_call.1} parent=1 // pred_check
      _
    $region39: #{tpu_custom_call.1} parent=1 // pred_check_branch
      %1423 = sbr.rel (0) target = $region41
    $region40: #{tpu_custom_call.1} parent=1 // pred_region
      _
    $region41: #{tpu_custom_call.1} parent=1 // pred_fallthru
      _
    %1424 = vsyncpa [#allocation5], 1

</llo_original>
